<compile_context>
chip_gen: v5e
topology: v5e:2x2
jax: 0.10.0
libtpu: 0.0.40
codegen_flags: <defaults>
</compile_context>

<pallas_src>
import functools
import math

import jax
import jax.numpy as jnp
from jax.experimental import pallas as pl
from jax.experimental.pallas import tpu as pltpu

# ----------------------------------------------------------------------------
# Config (small synthetic DistilBERT)
# ----------------------------------------------------------------------------
CFG = dict(
    vocab=100,
    max_pos=32,
    hidden=128,
    heads=2,          # head_dim = 64
    layers=2,
    ffn=256,
    classifier_dim=128,
    num_classes=4,
    use_cls=True,
    ln_eps=1e-12,
)

BF16 = jnp.bfloat16


# ----------------------------------------------------------------------------
# Kernel helpers
# ----------------------------------------------------------------------------
def _layernorm(x, g, b, eps):
    mu = jnp.mean(x, axis=-1, keepdims=True)
    var = jnp.mean(jnp.square(x - mu), axis=-1, keepdims=True)
    return (x - mu) * jax.lax.rsqrt(var + eps) * g + b


# ----------------------------------------------------------------------------
# Fused whole-model kernel: grid=(B, L); activations (S, H) resident in VMEM
# ----------------------------------------------------------------------------
def _model_kernel(x_ref, mask_ref,
                  qkv_w_ref, qkv_b_ref, o_w_ref, o_b_ref,
                  ln1_g_ref, ln1_b_ref,
                  f1_w_ref, f1_b_ref, f2_w_ref, f2_b_ref,
                  ln2_g_ref, ln2_b_ref,
                  c1_w_ref, c1_b_ref, c2_w_ref, c2_b_ref,
                  logits_ref, x_sc,
                  *, S, nH, Dh, scale, eps, use_cls):
    l = pl.program_id(1)

    # --- layer 0: load embedding-LN'd activations into resident VMEM scratch -
    @pl.when(l == 0)
    def _():
        x_sc[...] = x_ref[...]

    x = x_sc[...]                       # (S, H) f32, persists across layers
    xb = x.astype(BF16)
    mask_add = mask_ref[...]            # (1, S) additive mask: 0 / -1e9

    # --- multi-head attention from per-head weight blocks ---------------------
    # Equivalent to fused QKV + head split + concat + out-proj, but with no
    # unaligned lane slices, no concatenates, and no in-kernel transposes.
    attn = jnp.zeros_like(x)
    for h in range(nH):                 # static unroll, nH = 2
        qh = (jnp.dot(xb, qkv_w_ref[h],
                      preferred_element_type=jnp.float32)
              + qkv_b_ref[h:h + 1, :])
        kh = (jnp.dot(xb, qkv_w_ref[nH + h],
                      preferred_element_type=jnp.float32)
              + qkv_b_ref[nH + h:nH + h + 1, :])
        vh = (jnp.dot(xb, qkv_w_ref[2 * nH + h],
                      preferred_element_type=jnp.float32)
              + qkv_b_ref[2 * nH + h:2 * nH + h + 1, :])
        # q @ k^T via NT dot_general (no transpose materialized); f32 softmax.
        s = jax.lax.dot_general(qh.astype(BF16), kh.astype(BF16),
                                (((1,), (1,)), ((), ())),
                                preferred_element_type=jnp.float32)
        s = s * scale + mask_add
        s = s - jnp.max(s, axis=-1, keepdims=True)
        e = jnp.exp(s)
        p = e / jnp.sum(e, axis=-1, keepdims=True)      # exact (parity-safe)
        ch = jnp.dot(p.astype(BF16), vh.astype(BF16),
                     preferred_element_type=jnp.float32)            # (S, Dh)
        attn = attn + jnp.dot(ch.astype(BF16), o_w_ref[h],
                              preferred_element_type=jnp.float32)   # (S, H)
    attn = attn + o_b_ref[...]

    # --- residual + LayerNorm --------------------------------------------------
    x = _layernorm(attn + x, ln1_g_ref[...], ln1_b_ref[...], eps)

    # --- FFN (GELU) + residual + LayerNorm -------------------------------------
    xb = x.astype(BF16)
    h1 = jnp.dot(xb, f1_w_ref[...],
                 preferred_element_type=jnp.float32) + f1_b_ref[...]
    # TODO(synk): HF DistilBERT uses exact erf-GELU; tanh approximation used here.
    h1 = jax.nn.gelu(h1, approximate=True)
    h2 = jnp.dot(h1.astype(BF16), f2_w_ref[...],
                 preferred_element_type=jnp.float32) + f2_b_ref[...]
    x = _layernorm(h2 + x, ln2_g_ref[...], ln2_b_ref[...], eps)

    x_sc[...] = x                        # carry to next layer (VMEM-resident)

    # --- last layer: pooling + classifier head (Linear -> ReLU -> Linear) ------
    @pl.when(l == pl.num_programs(1) - 1)
    def _():
        if use_cls:
            pooled = x[0:1, :]                                     # (1, H)
        else:
            m01 = jnp.where(mask_add >= -0.5, 1.0, 0.0)            # (1, S)
            summed = jnp.dot(m01, x, preferred_element_type=jnp.float32)
            cnt = jnp.maximum(jnp.sum(m01), 1e-9)
            pooled = summed / cnt                                  # (1, H)

        hcls = jnp.dot(pooled.astype(BF16), c1_w_ref[...],
                       preferred_element_type=jnp.float32) + c1_b_ref[...]
        hcls = jnp.maximum(hcls, 0.0)     # ReLU; Dropout is identity in eval
        logits = jnp.dot(hcls.astype(BF16), c2_w_ref[...],
                         preferred_element_type=jnp.float32) + c2_b_ref[...]
        logits_ref[...] = logits.astype(logits_ref.dtype)


def pallas_distilbert(x_norm, mask_add, p, cfg, B, S):
    H, F, L = cfg["hidden"], cfg["ffn"], cfg["layers"]
    nH = cfg["heads"]
    Dh = H // nH
    D, C = cfg["classifier_dim"], cfg["num_classes"]

    def const2d(s1, s2):
        return pl.BlockSpec((s1, s2), lambda b, l: (0, 0))

    def per_layer(*dims):
        n = len(dims)
        return pl.BlockSpec((None,) + dims, lambda b, l, _n=n: (l,) + (0,) * _n)

    def per_batch(*dims):
        n = len(dims)
        return pl.BlockSpec((None,) + dims, lambda b, l, _n=n: (b,) + (0,) * _n)

    kernel = functools.partial(
        _model_kernel, S=S, nH=nH, Dh=Dh,
        scale=1.0 / math.sqrt(Dh),
        eps=cfg["ln_eps"], use_cls=cfg["use_cls"])

    out = pl.pallas_call(
        kernel,
        out_shape=jax.ShapeDtypeStruct((B, 1, C), jnp.float32),
        grid=(B, L),
        in_specs=[
            per_batch(S, H),                       # embedding-LN'd activations
            per_batch(1, S),                       # additive attention mask
            per_layer(3 * nH, H, Dh),              # per-head Q/K/V weights (bf16)
            per_layer(3 * nH, Dh),                 # per-head Q/K/V biases (f32)
            per_layer(nH, Dh, H),                  # per-head out-proj weights
            per_layer(1, H),                       # out-proj bias
            per_layer(1, H), per_layer(1, H),      # LN 1
            per_layer(H, F), per_layer(1, F),      # FFN 1
            per_layer(F, H), per_layer(1, H),      # FFN 2
            per_layer(1, H), per_layer(1, H),      # LN 2
            const2d(H, D), const2d(1, D),          # classifier lin 1
            const2d(D, C), const2d(1, C),          # classifier lin 2
        ],
        out_specs=pl.BlockSpec((None, 1, C), lambda b, l: (b, 0, 0)),
        scratch_shapes=[pltpu.VMEM((S, H), jnp.float32)],   # resident activations
        compiler_params=pltpu.CompilerParams(
            dimension_semantics=("parallel", "arbitrary"),   # batch || , layer carries
            vmem_limit_bytes=64 * 1024 * 1024),
    )(x_norm, mask_add,
      p["qkv_w"], p["qkv_b"], p["o_w"], p["o_b"],
      p["ln1_g"], p["ln1_b"],
      p["f1_w"], p["f1_b"], p["f2_w"], p["f2_b"],
      p["ln2_g"], p["ln2_b"],
      p["cls_w1"], p["cls_b1"], p["cls_w2"], p["cls_b2"])
    return out.reshape(B, C)


# ----------------------------------------------------------------------------
# Parameter initialization (deterministic, synthetic) + packing for the kernel
# ----------------------------------------------------------------------------
def init_params(key, cfg):
    H, F, V, P = cfg["hidden"], cfg["ffn"], cfg["vocab"], cfg["max_pos"]

    def nxt():
        nonlocal key
        key, sub = jax.random.split(key)
        return sub

    def dense(din, dout):
        return (0.02 * jax.random.normal(nxt(), (din, dout), jnp.float32),
                jnp.zeros((dout,), jnp.float32))

    params = dict(
        word_emb=0.02 * jax.random.normal(nxt(), (V, H), jnp.float32),
        pos_emb=0.02 * jax.random.normal(nxt(), (P, H), jnp.float32),
        emb_ln_g=jnp.ones((H,), jnp.float32),
        emb_ln_b=jnp.zeros((H,), jnp.float32),
        layers=[],
    )
    for _ in range(cfg["layers"]):
        qw, qb = dense(H, H)
        kw, kb = dense(H, H)
        vw, vb = dense(H, H)
        ow, ob = dense(H, H)
        f1w, f1b = dense(H, F)
        f2w, f2b = dense(F, H)
        params["layers"].append(dict(
            q_w=qw, q_b=qb, k_w=kw, k_b=kb, v_w=vw, v_b=vb, o_w=ow, o_b=ob,
            sa_ln_g=jnp.ones((H,), jnp.float32), sa_ln_b=jnp.zeros((H,), jnp.float32),
            f1_w=f1w, f1_b=f1b, f2_w=f2w, f2_b=f2b,
            out_ln_g=jnp.ones((H,), jnp.float32), out_ln_b=jnp.zeros((H,), jnp.float32),
        ))
    c1w, c1b = dense(H, cfg["classifier_dim"])
    c2w, c2b = dense(cfg["classifier_dim"], cfg["num_classes"])
    params.update(cls_w1=c1w, cls_b1=c1b, cls_w2=c2w, cls_b2=c2b)
    return params


def pack_params(params, cfg):
    """Stack per-layer weights along a leading L axis, split attention weights
    per head (no in-kernel lane slicing needed), cast matmul weights to bf16."""
    H, F = cfg["hidden"], cfg["ffn"]
    nH = cfg["heads"]
    Dh = H // nH

    def stack(fn):
        return jnp.stack([fn(lp) for lp in params["layers"]], axis=0)

    def split_w(w):    # (H, H) -> (nH, H, Dh): per-head output-column blocks
        return jnp.stack([w[:, h * Dh:(h + 1) * Dh] for h in range(nH)], axis=0)

    def split_b(b):    # (H,) -> (nH, Dh)
        return b.reshape(nH, Dh)

    return dict(
        word_emb=params["word_emb"],
        pos_emb=params["pos_emb"],
        emb_ln_g=params["emb_ln_g"],
        emb_ln_b=params["emb_ln_b"],
        # (L, 3*nH, H, Dh): [Q heads..., K heads..., V heads...], bf16
        qkv_w=stack(lambda lp: jnp.concatenate(
            [split_w(lp["q_w"]), split_w(lp["k_w"]), split_w(lp["v_w"])],
            axis=0)).astype(BF16),
        # (L, 3*nH, Dh), f32
        qkv_b=stack(lambda lp: jnp.concatenate(
            [split_b(lp["q_b"]), split_b(lp["k_b"]), split_b(lp["v_b"])],
            axis=0)),
        # (L, nH, Dh, H): per-head rows of the out projection, bf16
        o_w=stack(lambda lp: lp["o_w"].reshape(nH, Dh, H)).astype(BF16),
        o_b=stack(lambda lp: lp["o_b"].reshape(1, H)),
        ln1_g=stack(lambda lp: lp["sa_ln_g"].reshape(1, H)),
        ln1_b=stack(lambda lp: lp["sa_ln_b"].reshape(1, H)),
        f1_w=stack(lambda lp: lp["f1_w"]).astype(BF16),
        f1_b=stack(lambda lp: lp["f1_b"].reshape(1, F)),
        f2_w=stack(lambda lp: lp["f2_w"]).astype(BF16),
        f2_b=stack(lambda lp: lp["f2_b"].reshape(1, H)),
        ln2_g=stack(lambda lp: lp["out_ln_g"].reshape(1, H)),
        ln2_b=stack(lambda lp: lp["out_ln_b"].reshape(1, H)),
        cls_w1=params["cls_w1"].astype(BF16),
        cls_b1=params["cls_b1"].reshape(1, -1),
        cls_w2=params["cls_w2"].astype(BF16),
        cls_b2=params["cls_b2"].reshape(1, -1),
    )


# ----------------------------------------------------------------------------
# Forward pass
# ----------------------------------------------------------------------------
def distilbert_classifier_forward(packed, input_ids, attention_mask, cfg):
    B, S = input_ids.shape
    H = cfg["hidden"]

    # Embeddings (gather is glue) + embedding LayerNorm (pure VPU op) in the
    # wrapper so the kernel input is already layer-0-ready.
    x = packed["word_emb"][input_ids] + packed["pos_emb"][:S][None, :, :]
    x = x.astype(jnp.float32)
    mu = jnp.mean(x, axis=-1, keepdims=True)
    var = jnp.mean(jnp.square(x - mu), axis=-1, keepdims=True)
    x = ((x - mu) * jax.lax.rsqrt(var + cfg["ln_eps"])
         * packed["emb_ln_g"] + packed["emb_ln_b"])                 # (B, S, H)

    # Additive attention mask (B, 1, S): 0 on valid, -1e9 on padding (f32).
    mask_add = ((1.0 - attention_mask.astype(jnp.float32)) * -1e9).reshape(B, 1, S)

    return pallas_distilbert(x, mask_add, packed, cfg, B, S)


# ----------------------------------------------------------------------------
if __name__ == "__main__":
    key = jax.random.PRNGKey(0)
    pkey, idkey = jax.random.split(key)

    params = init_params(pkey, CFG)
    packed = pack_params(params, CFG)

    B, S = 2, 8
    input_ids = jax.random.randint(idkey, (B, S), 0, CFG["vocab"], dtype=jnp.int32)
    attention_mask = jnp.array(
        [[1, 1, 1, 1, 1, 1, 1, 1],
         [1, 1, 1, 1, 1, 1, 0, 0]], dtype=jnp.int32)

    fwd = jax.jit(lambda p, ids, m: distilbert_classifier_forward(p, ids, m, CFG))
    logits = fwd(packed, input_ids, attention_mask)
    logits = jax.block_until_ready(logits)

    assert logits.shape == (B, CFG["num_classes"])
    assert bool(jnp.all(jnp.isfinite(logits)))
    print("KERNEL_OK")
</pallas_src>

<mosaic_0001>
module attributes {stable_mosaic.version = 11 : i64} {
  func.func @_model_kernel(%arg0: i32, %arg1: i32, %arg2: memref<1x8x128xf32, #tpu.memory_space<vmem>>, %arg3: memref<1x1x8xf32, #tpu.memory_space<vmem>>, %arg4: memref<1x6x128x64xbf16, #tpu.memory_space<vmem>>, %arg5: memref<1x6x64xf32, #tpu.memory_space<vmem>>, %arg6: memref<1x2x64x128xbf16, #tpu.memory_space<vmem>>, %arg7: memref<1x1x128xf32, #tpu.memory_space<vmem>>, %arg8: memref<1x1x128xf32, #tpu.memory_space<vmem>>, %arg9: memref<1x1x128xf32, #tpu.memory_space<vmem>>, %arg10: memref<1x128x256xbf16, #tpu.memory_space<vmem>>, %arg11: memref<1x1x256xf32, #tpu.memory_space<vmem>>, %arg12: memref<1x256x128xbf16, #tpu.memory_space<vmem>>, %arg13: memref<1x1x128xf32, #tpu.memory_space<vmem>>, %arg14: memref<1x1x128xf32, #tpu.memory_space<vmem>>, %arg15: memref<1x1x128xf32, #tpu.memory_space<vmem>>, %arg16: memref<128x128xbf16, #tpu.memory_space<vmem>>, %arg17: memref<1x128xf32, #tpu.memory_space<vmem>>, %arg18: memref<128x4xbf16, #tpu.memory_space<vmem>>, %arg19: memref<1x4xf32, #tpu.memory_space<vmem>>, %arg20: memref<1x1x4xf32, #tpu.memory_space<vmem>>, %arg21: memref<8x128xf32, #tpu.memory_space<vmem>>) attributes {dimension_semantics = [#tpu.dimension_semantics<parallel>, #tpu.dimension_semantics<arbitrary>], iteration_bounds = array<i64: 2, 2>, scalar_prefetch = 0 : i64, scratch_operands = 1 : i64, tpu.core_type = #tpu.core_type<tc>, window_params = [{transform_indices = @transform_0, window_bounds = array<i64: 1, 8, 128>}, {transform_indices = @transform_1, window_bounds = array<i64: 1, 1, 8>}, {transform_indices = @transform_2, window_bounds = array<i64: 1, 6, 128, 64>}, {transform_indices = @transform_3, window_bounds = array<i64: 1, 6, 64>}, {transform_indices = @transform_4, window_bounds = array<i64: 1, 2, 64, 128>}, {transform_indices = @transform_5, window_bounds = array<i64: 1, 1, 128>}, {transform_indices = @transform_6, window_bounds = array<i64: 1, 1, 128>}, {transform_indices = @transform_7, window_bounds = array<i64: 1, 1, 128>}, {transform_indices = @transform_8, window_bounds = array<i64: 1, 128, 256>}, {transform_indices = @transform_9, window_bounds = array<i64: 1, 1, 256>}, {transform_indices = @transform_10, window_bounds = array<i64: 1, 256, 128>}, {transform_indices = @transform_11, window_bounds = array<i64: 1, 1, 128>}, {transform_indices = @transform_12, window_bounds = array<i64: 1, 1, 128>}, {transform_indices = @transform_13, window_bounds = array<i64: 1, 1, 128>}, {pipeline_mode = #tpu.pipeline_mode<synchronous>, transform_indices = @transform_14, window_bounds = array<i64: 128, 128>}, {pipeline_mode = #tpu.pipeline_mode<synchronous>, transform_indices = @transform_15, window_bounds = array<i64: 1, 128>}, {pipeline_mode = #tpu.pipeline_mode<synchronous>, transform_indices = @transform_16, window_bounds = array<i64: 128, 4>}, {pipeline_mode = #tpu.pipeline_mode<synchronous>, transform_indices = @transform_17, window_bounds = array<i64: 1, 4>}, {transform_indices = @transform_18, window_bounds = array<i64: 1, 1, 4>}]} {
    %c0_i32 = arith.constant 0 : i32
    %0 = arith.cmpi eq, %arg1, %c0_i32 : i32
    %1 = arith.extui %0 : i1 to i32
    %c0_i32_0 = arith.constant 0 : i32
    %2 = arith.cmpi ne, %1, %c0_i32_0 : i32
    scf.if %2 {
      %c0_114 = arith.constant 0 : index
      %c0_115 = arith.constant 0 : index
      %c0_116 = arith.constant 0 : index
      %189 = vector.load %arg2[%c0_114, %c0_115, %c0_116] : memref<1x8x128xf32, #tpu.memory_space<vmem>>, vector<1x8x128xf32>
      %190 = vector.shape_cast %189 : vector<1x8x128xf32> to vector<8x128xf32>
      %c0_117 = arith.constant 0 : index
      %c0_118 = arith.constant 0 : index
      %191 = vector.load %arg21[%c0_117, %c0_118] : memref<8x128xf32, #tpu.memory_space<vmem>>, vector<8x128xf32>
      tpu.vector_store %arg21[%c0_117, %c0_118], %190 {strides = array<i32>} : memref<8x128xf32, #tpu.memory_space<vmem>>, vector<8x128xf32>,
    } else {
    }
    %c0 = arith.constant 0 : index
    %c0_1 = arith.constant 0 : index
    %3 = vector.load %arg21[%c0, %c0_1] : memref<8x128xf32, #tpu.memory_space<vmem>>, vector<8x128xf32>
    %4 = arith.truncf %3 : vector<8x128xf32> to vector<8x128xbf16>
    %c0_2 = arith.constant 0 : index
    %c0_3 = arith.constant 0 : index
    %c0_4 = arith.constant 0 : index
    %5 = vector.load %arg3[%c0_2, %c0_3, %c0_4] : memref<1x1x8xf32, #tpu.memory_space<vmem>>, vector<1x1x8xf32>
    %6 = vector.shape_cast %5 : vector<1x1x8xf32> to vector<1x8xf32>
    %cst = arith.constant 0.000000e+00 : f32
    %7 = vector.broadcast %cst : f32 to vector<8x128xf32>
    %c0_5 = arith.constant 0 : index
    %c0_6 = arith.constant 0 : index
    %c0_7 = arith.constant 0 : index
    %c0_8 = arith.constant 0 : index
    %8 = vector.load %arg4[%c0_5, %c0_6, %c0_7, %c0_8] : memref<1x6x128x64xbf16, #tpu.memory_space<vmem>>, vector<1x1x128x64xbf16>
    %9 = vector.shape_cast %8 : vector<1x1x128x64xbf16> to vector<128x64xbf16>
    %cst_9 = arith.constant dense<0.000000e+00> : vector<8x64xf32>
    %10 = tpu.matmul %4, %9, %cst_9 {dimension_numbers = #tpu.dot_dimension_numbers<[1], [0], [0], [1], [0, 0, 1, 1], [], []>} : vector<8x128xbf16>, vector<128x64xbf16>, vector<8x64xf32> -> vector<8x64xf32>
    %c0_10 = arith.constant 0 : index
    %c0_11 = arith.constant 0 : index
    %c0_12 = arith.constant 0 : index
    %11 = vector.load %arg5[%c0_10, %c0_11, %c0_12] : memref<1x6x64xf32, #tpu.memory_space<vmem>>, vector<1x1x64xf32>
    %12 = vector.shape_cast %11 : vector<1x1x64xf32> to vector<1x64xf32>
    %13 = vector.broadcast %12 : vector<1x64xf32> to vector<8x64xf32>
    %14 = arith.addf %10, %13 : vector<8x64xf32>
    %c0_13 = arith.constant 0 : index
    %c2 = arith.constant 2 : index
    %c0_14 = arith.constant 0 : index
    %c0_15 = arith.constant 0 : index
    %15 = vector.load %arg4[%c0_13, %c2, %c0_14, %c0_15] : memref<1x6x128x64xbf16, #tpu.memory_space<vmem>>, vector<1x1x128x64xbf16>
    %16 = vector.shape_cast %15 : vector<1x1x128x64xbf16> to vector<128x64xbf16>
    %cst_16 = arith.constant dense<0.000000e+00> : vector<8x64xf32>
    %17 = tpu.matmul %4, %16, %cst_16 {dimension_numbers = #tpu.dot_dimension_numbers<[1], [0], [0], [1], [0, 0, 1, 1], [], []>} : vector<8x128xbf16>, vector<128x64xbf16>, vector<8x64xf32> -> vector<8x64xf32>
    %c0_17 = arith.constant 0 : index
    %c2_18 = arith.constant 2 : index
    %c0_19 = arith.constant 0 : index
    %18 = vector.load %arg5[%c0_17, %c2_18, %c0_19] : memref<1x6x64xf32, #tpu.memory_space<vmem>>, vector<1x1x64xf32>
    %19 = vector.shape_cast %18 : vector<1x1x64xf32> to vector<1x64xf32>
    %20 = vector.broadcast %19 : vector<1x64xf32> to vector<8x64xf32>
    %21 = arith.addf %17, %20 : vector<8x64xf32>
    %c0_20 = arith.constant 0 : index
    %c4 = arith.constant 4 : index
    %c0_21 = arith.constant 0 : index
    %c0_22 = arith.constant 0 : index
    %22 = vector.load %arg4[%c0_20, %c4, %c0_21, %c0_22] : memref<1x6x128x64xbf16, #tpu.memory_space<vmem>>, vector<1x1x128x64xbf16>
    %23 = vector.shape_cast %22 : vector<1x1x128x64xbf16> to vector<128x64xbf16>
    %cst_23 = arith.constant dense<0.000000e+00> : vector<8x64xf32>
    %24 = tpu.matmul %4, %23, %cst_23 {dimension_numbers = #tpu.dot_dimension_numbers<[1], [0], [0], [1], [0, 0, 1, 1], [], []>} : vector<8x128xbf16>, vector<128x64xbf16>, vector<8x64xf32> -> vector<8x64xf32>
    %c0_24 = arith.constant 0 : index
    %c4_25 = arith.constant 4 : index
    %c0_26 = arith.constant 0 : index
    %25 = vector.load %arg5[%c0_24, %c4_25, %c0_26] : memref<1x6x64xf32, #tpu.memory_space<vmem>>, vector<1x1x64xf32>
    %26 = vector.shape_cast %25 : vector<1x1x64xf32> to vector<1x64xf32>
    %27 = vector.broadcast %26 : vector<1x64xf32> to vector<8x64xf32>
    %28 = arith.addf %24, %27 : vector<8x64xf32>
    %29 = arith.truncf %14 : vector<8x64xf32> to vector<8x64xbf16>
    %30 = arith.truncf %21 : vector<8x64xf32> to vector<8x64xbf16>
    %cst_27 = arith.constant dense<0.000000e+00> : vector<8x8xf32>
    %31 = tpu.matmul %29, %30, %cst_27 {dimension_numbers = #tpu.dot_dimension_numbers<[1], [1], [0], [0], [0, 0, 1, 0], [], []>} : vector<8x64xbf16>, vector<8x64xbf16>, vector<8x8xf32> -> vector<8x8xf32>
    %cst_28 = arith.constant 1.250000e-01 : f32
    %32 = vector.broadcast %cst_28 : f32 to vector<8x8xf32>
    %33 = arith.mulf %31, %32 : vector<8x8xf32>
    %34 = vector.broadcast %6 : vector<1x8xf32> to vector<8x8xf32>
    %35 = arith.addf %33, %34 : vector<8x8xf32>
    %cst_29 = arith.constant dense<0xFF800000> : vector<8xf32>
    %36 = vector.multi_reduction <maximumf>, %35, %cst_29 [1] : vector<8x8xf32> to vector<8xf32>
    %37 = vector.shape_cast %36 : vector<8xf32> to vector<8x1xf32>
    %38 = vector.broadcast %37 : vector<8x1xf32> to vector<8x8xf32>
    %39 = arith.subf %35, %38 : vector<8x8xf32>
    %40 = math.exp %39 : vector<8x8xf32>
    %cst_30 = arith.constant dense<0.000000e+00> : vector<8xf32>
    %41 = vector.multi_reduction <add>, %40, %cst_30 [1] : vector<8x8xf32> to vector<8xf32>
    %42 = vector.shape_cast %41 : vector<8xf32> to vector<8x1xf32>
    %43 = vector.broadcast %42 : vector<8x1xf32> to vector<8x8xf32>
    %44 = arith.divf %40, %43 : vector<8x8xf32>
    %45 = arith.truncf %44 : vector<8x8xf32> to vector<8x8xbf16>
    %46 = arith.truncf %28 : vector<8x64xf32> to vector<8x64xbf16>
    %cst_31 = arith.constant dense<0.000000e+00> : vector<8x64xf32>
    %47 = tpu.matmul %45, %46, %cst_31 {dimension_numbers = #tpu.dot_dimension_numbers<[1], [0], [0], [1], [0, 0, 1, 1], [], []>} : vector<8x8xbf16>, vector<8x64xbf16>, vector<8x64xf32> -> vector<8x64xf32>
    %48 = arith.truncf %47 : vector<8x64xf32> to vector<8x64xbf16>
    %c0_32 = arith.constant 0 : index
    %c0_33 = arith.constant 0 : index
    %c0_34 = arith.constant 0 : index
    %c0_35 = arith.constant 0 : index
    %49 = vector.load %arg6[%c0_32, %c0_33, %c0_34, %c0_35] : memref<1x2x64x128xbf16, #tpu.memory_space<vmem>>, vector<1x1x64x128xbf16>
    %50 = vector.shape_cast %49 : vector<1x1x64x128xbf16> to vector<64x128xbf16>
    %cst_36 = arith.constant dense<0.000000e+00> : vector<8x128xf32>
    %51 = tpu.matmul %48, %50, %cst_36 {dimension_numbers = #tpu.dot_dimension_numbers<[1], [0], [0], [1], [0, 0, 1, 1], [], []>} : vector<8x64xbf16>, vector<64x128xbf16>, vector<8x128xf32> -> vector<8x128xf32>
    %52 = arith.addf %7, %51 : vector<8x128xf32>
    %c0_37 = arith.constant 0 : index
    %c1 = arith.constant 1 : index
    %c0_38 = arith.constant 0 : index
    %c0_39 = arith.constant 0 : index
    %53 = vector.load %arg4[%c0_37, %c1, %c0_38, %c0_39] : memref<1x6x128x64xbf16, #tpu.memory_space<vmem>>, vector<1x1x128x64xbf16>
    %54 = vector.shape_cast %53 : vector<1x1x128x64xbf16> to vector<128x64xbf16>
    %cst_40 = arith.constant dense<0.000000e+00> : vector<8x64xf32>
    %55 = tpu.matmul %4, %54, %cst_40 {dimension_numbers = #tpu.dot_dimension_numbers<[1], [0], [0], [1], [0, 0, 1, 1], [], []>} : vector<8x128xbf16>, vector<128x64xbf16>, vector<8x64xf32> -> vector<8x64xf32>
    %c0_41 = arith.constant 0 : index
    %c1_42 = arith.constant 1 : index
    %c0_43 = arith.constant 0 : index
    %56 = vector.load %arg5[%c0_41, %c1_42, %c0_43] : memref<1x6x64xf32, #tpu.memory_space<vmem>>, vector<1x1x64xf32>
    %57 = vector.shape_cast %56 : vector<1x1x64xf32> to vector<1x64xf32>
    %58 = vector.broadcast %57 : vector<1x64xf32> to vector<8x64xf32>
    %59 = arith.addf %55, %58 : vector<8x64xf32>
    %c0_44 = arith.constant 0 : index
    %c3 = arith.constant 3 : index
    %c0_45 = arith.constant 0 : index
    %c0_46 = arith.constant 0 : index
    %60 = vector.load %arg4[%c0_44, %c3, %c0_45, %c0_46] : memref<1x6x128x64xbf16, #tpu.memory_space<vmem>>, vector<1x1x128x64xbf16>
    %61 = vector.shape_cast %60 : vector<1x1x128x64xbf16> to vector<128x64xbf16>
    %cst_47 = arith.constant dense<0.000000e+00> : vector<8x64xf32>
    %62 = tpu.matmul %4, %61, %cst_47 {dimension_numbers = #tpu.dot_dimension_numbers<[1], [0], [0], [1], [0, 0, 1, 1], [], []>} : vector<8x128xbf16>, vector<128x64xbf16>, vector<8x64xf32> -> vector<8x64xf32>
    %c0_48 = arith.constant 0 : index
    %c3_49 = arith.constant 3 : index
    %c0_50 = arith.constant 0 : index
    %63 = vector.load %arg5[%c0_48, %c3_49, %c0_50] : memref<1x6x64xf32, #tpu.memory_space<vmem>>, vector<1x1x64xf32>
    %64 = vector.shape_cast %63 : vector<1x1x64xf32> to vector<1x64xf32>
    %65 = vector.broadcast %64 : vector<1x64xf32> to vector<8x64xf32>
    %66 = arith.addf %62, %65 : vector<8x64xf32>
    %c0_51 = arith.constant 0 : index
    %c5 = arith.constant 5 : index
    %c0_52 = arith.constant 0 : index
    %c0_53 = arith.constant 0 : index
    %67 = vector.load %arg4[%c0_51, %c5, %c0_52, %c0_53] : memref<1x6x128x64xbf16, #tpu.memory_space<vmem>>, vector<1x1x128x64xbf16>
    %68 = vector.shape_cast %67 : vector<1x1x128x64xbf16> to vector<128x64xbf16>
    %cst_54 = arith.constant dense<0.000000e+00> : vector<8x64xf32>
    %69 = tpu.matmul %4, %68, %cst_54 {dimension_numbers = #tpu.dot_dimension_numbers<[1], [0], [0], [1], [0, 0, 1, 1], [], []>} : vector<8x128xbf16>, vector<128x64xbf16>, vector<8x64xf32> -> vector<8x64xf32>
    %c0_55 = arith.constant 0 : index
    %c5_56 = arith.constant 5 : index
    %c0_57 = arith.constant 0 : index
    %70 = vector.load %arg5[%c0_55, %c5_56, %c0_57] : memref<1x6x64xf32, #tpu.memory_space<vmem>>, vector<1x1x64xf32>
    %71 = vector.shape_cast %70 : vector<1x1x64xf32> to vector<1x64xf32>
    %72 = vector.broadcast %71 : vector<1x64xf32> to vector<8x64xf32>
    %73 = arith.addf %69, %72 : vector<8x64xf32>
    %74 = arith.truncf %59 : vector<8x64xf32> to vector<8x64xbf16>
    %75 = arith.truncf %66 : vector<8x64xf32> to vector<8x64xbf16>
    %cst_58 = arith.constant dense<0.000000e+00> : vector<8x8xf32>
    %76 = tpu.matmul %74, %75, %cst_58 {dimension_numbers = #tpu.dot_dimension_numbers<[1], [1], [0], [0], [0, 0, 1, 0], [], []>} : vector<8x64xbf16>, vector<8x64xbf16>, vector<8x8xf32> -> vector<8x8xf32>
    %cst_59 = arith.constant 1.250000e-01 : f32
    %77 = vector.broadcast %cst_59 : f32 to vector<8x8xf32>
    %78 = arith.mulf %76, %77 : vector<8x8xf32>
    %79 = vector.broadcast %6 : vector<1x8xf32> to vector<8x8xf32>
    %80 = arith.addf %78, %79 : vector<8x8xf32>
    %cst_60 = arith.constant dense<0xFF800000> : vector<8xf32>
    %81 = vector.multi_reduction <maximumf>, %80, %cst_60 [1] : vector<8x8xf32> to vector<8xf32>
    %82 = vector.shape_cast %81 : vector<8xf32> to vector<8x1xf32>
    %83 = vector.broadcast %82 : vector<8x1xf32> to vector<8x8xf32>
    %84 = arith.subf %80, %83 : vector<8x8xf32>
    %85 = math.exp %84 : vector<8x8xf32>
    %cst_61 = arith.constant dense<0.000000e+00> : vector<8xf32>
    %86 = vector.multi_reduction <add>, %85, %cst_61 [1] : vector<8x8xf32> to vector<8xf32>
    %87 = vector.shape_cast %86 : vector<8xf32> to vector<8x1xf32>
    %88 = vector.broadcast %87 : vector<8x1xf32> to vector<8x8xf32>
    %89 = arith.divf %85, %88 : vector<8x8xf32>
    %90 = arith.truncf %89 : vector<8x8xf32> to vector<8x8xbf16>
    %91 = arith.truncf %73 : vector<8x64xf32> to vector<8x64xbf16>
    %cst_62 = arith.constant dense<0.000000e+00> : vector<8x64xf32>
    %92 = tpu.matmul %90, %91, %cst_62 {dimension_numbers = #tpu.dot_dimension_numbers<[1], [0], [0], [1], [0, 0, 1, 1], [], []>} : vector<8x8xbf16>, vector<8x64xbf16>, vector<8x64xf32> -> vector<8x64xf32>
    %93 = arith.truncf %92 : vector<8x64xf32> to vector<8x64xbf16>
    %c0_63 = arith.constant 0 : index
    %c1_64 = arith.constant 1 : index
    %c0_65 = arith.constant 0 : index
    %c0_66 = arith.constant 0 : index
    %94 = vector.load %arg6[%c0_63, %c1_64, %c0_65, %c0_66] : memref<1x2x64x128xbf16, #tpu.memory_space<vmem>>, vector<1x1x64x128xbf16>
    %95 = vector.shape_cast %94 : vector<1x1x64x128xbf16> to vector<64x128xbf16>
    %cst_67 = arith.constant dense<0.000000e+00> : vector<8x128xf32>
    %96 = tpu.matmul %93, %95, %cst_67 {dimension_numbers = #tpu.dot_dimension_numbers<[1], [0], [0], [1], [0, 0, 1, 1], [], []>} : vector<8x64xbf16>, vector<64x128xbf16>, vector<8x128xf32> -> vector<8x128xf32>
    %97 = arith.addf %52, %96 : vector<8x128xf32>
    %c0_68 = arith.constant 0 : index
    %c0_69 = arith.constant 0 : index
    %c0_70 = arith.constant 0 : index
    %98 = vector.load %arg7[%c0_68, %c0_69, %c0_70] : memref<1x1x128xf32, #tpu.memory_space<vmem>>, vector<1x1x128xf32>
    %99 = vector.shape_cast %98 : vector<1x1x128xf32> to vector<1x128xf32>
    %100 = vector.broadcast %99 : vector<1x128xf32> to vector<8x128xf32>
    %101 = arith.addf %97, %100 : vector<8x128xf32>
    %102 = arith.addf %101, %3 : vector<8x128xf32>
    %c0_71 = arith.constant 0 : index
    %c0_72 = arith.constant 0 : index
    %c0_73 = arith.constant 0 : index
    %103 = vector.load %arg8[%c0_71, %c0_72, %c0_73] : memref<1x1x128xf32, #tpu.memory_space<vmem>>, vector<1x1x128xf32>
    %104 = vector.shape_cast %103 : vector<1x1x128xf32> to vector<1x128xf32>
    %c0_74 = arith.constant 0 : index
    %c0_75 = arith.constant 0 : index
    %c0_76 = arith.constant 0 : index
    %105 = vector.load %arg9[%c0_74, %c0_75, %c0_76] : memref<1x1x128xf32, #tpu.memory_space<vmem>>, vector<1x1x128xf32>
    %106 = vector.shape_cast %105 : vector<1x1x128xf32> to vector<1x128xf32>
    %cst_77 = arith.constant dense<0.000000e+00> : vector<8xf32>
    %107 = vector.multi_reduction <add>, %102, %cst_77 [1] : vector<8x128xf32> to vector<8xf32>
    %108 = vector.shape_cast %107 : vector<8xf32> to vector<8x1xf32>
    %cst_78 = arith.constant 1.280000e+02 : f32
    %109 = vector.broadcast %cst_78 : f32 to vector<8x1xf32>
    %110 = arith.divf %108, %109 : vector<8x1xf32>
    %111 = vector.broadcast %110 : vector<8x1xf32> to vector<8x128xf32>
    %112 = arith.subf %102, %111 : vector<8x128xf32>
    %113 = arith.mulf %112, %112 : vector<8x128xf32>
    %cst_79 = arith.constant dense<0.000000e+00> : vector<8xf32>
    %114 = vector.multi_reduction <add>, %113, %cst_79 [1] : vector<8x128xf32> to vector<8xf32>
    %115 = vector.shape_cast %114 : vector<8xf32> to vector<8x1xf32>
    %cst_80 = arith.constant 1.280000e+02 : f32
    %116 = vector.broadcast %cst_80 : f32 to vector<8x1xf32>
    %117 = arith.divf %115, %116 : vector<8x1xf32>
    %118 = vector.broadcast %110 : vector<8x1xf32> to vector<8x128xf32>
    %119 = arith.subf %102, %118 : vector<8x128xf32>
    %cst_81 = arith.constant 9.99999996E-13 : f32
    %120 = vector.broadcast %cst_81 : f32 to vector<8x1xf32>
    %121 = arith.addf %117, %120 : vector<8x1xf32>
    %122 = math.rsqrt %121 : vector<8x1xf32>
    %123 = vector.broadcast %122 : vector<8x1xf32> to vector<8x128xf32>
    %124 = arith.mulf %119, %123 : vector<8x128xf32>
    %125 = vector.broadcast %104 : vector<1x128xf32> to vector<8x128xf32>
    %126 = arith.mulf %124, %125 : vector<8x128xf32>
    %127 = vector.broadcast %106 : vector<1x128xf32> to vector<8x128xf32>
    %128 = arith.addf %126, %127 : vector<8x128xf32>
    %129 = arith.truncf %128 : vector<8x128xf32> to vector<8x128xbf16>
    %c0_82 = arith.constant 0 : index
    %c0_83 = arith.constant 0 : index
    %c0_84 = arith.constant 0 : index
    %130 = vector.load %arg10[%c0_82, %c0_83, %c0_84] : memref<1x128x256xbf16, #tpu.memory_space<vmem>>, vector<1x128x256xbf16>
    %131 = vector.shape_cast %130 : vector<1x128x256xbf16> to vector<128x256xbf16>
    %cst_85 = arith.constant dense<0.000000e+00> : vector<8x256xf32>
    %132 = tpu.matmul %129, %131, %cst_85 {dimension_numbers = #tpu.dot_dimension_numbers<[1], [0], [0], [1], [0, 0, 1, 1], [], []>} : vector<8x128xbf16>, vector<128x256xbf16>, vector<8x256xf32> -> vector<8x256xf32>
    %c0_86 = arith.constant 0 : index
    %c0_87 = arith.constant 0 : index
    %c0_88 = arith.constant 0 : index
    %133 = vector.load %arg11[%c0_86, %c0_87, %c0_88] : memref<1x1x256xf32, #tpu.memory_space<vmem>>, vector<1x1x256xf32>
    %134 = vector.shape_cast %133 : vector<1x1x256xf32> to vector<1x256xf32>
    %135 = vector.broadcast %134 : vector<1x256xf32> to vector<8x256xf32>
    %136 = arith.addf %132, %135 : vector<8x256xf32>
    %137 = arith.mulf %136, %136 : vector<8x256xf32>
    %138 = arith.mulf %136, %137 : vector<8x256xf32>
    %cst_89 = arith.constant 4.471500e-02 : f32
    %139 = vector.broadcast %cst_89 : f32 to vector<8x256xf32>
    %140 = arith.mulf %139, %138 : vector<8x256xf32>
    %141 = arith.addf %136, %140 : vector<8x256xf32>
    %cst_90 = arith.constant 0.797884583 : f32
    %142 = vector.broadcast %cst_90 : f32 to vector<8x256xf32>
    %143 = arith.mulf %142, %141 : vector<8x256xf32>
    %144 = math.tanh %143 : vector<8x256xf32>
    %cst_91 = arith.constant 1.000000e+00 : f32
    %145 = vector.broadcast %cst_91 : f32 to vector<8x256xf32>
    %146 = arith.addf %145, %144 : vector<8x256xf32>
    %cst_92 = arith.constant 5.000000e-01 : f32
    %147 = vector.broadcast %cst_92 : f32 to vector<8x256xf32>
    %148 = arith.mulf %147, %146 : vector<8x256xf32>
    %149 = arith.mulf %136, %148 : vector<8x256xf32>
    %150 = arith.truncf %149 : vector<8x256xf32> to vector<8x256xbf16>
    %c0_93 = arith.constant 0 : index
    %c0_94 = arith.constant 0 : index
    %c0_95 = arith.constant 0 : index
    %151 = vector.load %arg12[%c0_93, %c0_94, %c0_95] : memref<1x256x128xbf16, #tpu.memory_space<vmem>>, vector<1x256x128xbf16>
    %152 = vector.shape_cast %151 : vector<1x256x128xbf16> to vector<256x128xbf16>
    %cst_96 = arith.constant dense<0.000000e+00> : vector<8x128xf32>
    %153 = tpu.matmul %150, %152, %cst_96 {dimension_numbers = #tpu.dot_dimension_numbers<[1], [0], [0], [1], [0, 0, 1, 1], [], []>} : vector<8x256xbf16>, vector<256x128xbf16>, vector<8x128xf32> -> vector<8x128xf32>
    %c0_97 = arith.constant 0 : index
    %c0_98 = arith.constant 0 : index
    %c0_99 = arith.constant 0 : index
    %154 = vector.load %arg13[%c0_97, %c0_98, %c0_99] : memref<1x1x128xf32, #tpu.memory_space<vmem>>, vector<1x1x128xf32>
    %155 = vector.shape_cast %154 : vector<1x1x128xf32> to vector<1x128xf32>
    %156 = vector.broadcast %155 : vector<1x128xf32> to vector<8x128xf32>
    %157 = arith.addf %153, %156 : vector<8x128xf32>
    %158 = arith.addf %157, %128 : vector<8x128xf32>
    %c0_100 = arith.constant 0 : index
    %c0_101 = arith.constant 0 : index
    %c0_102 = arith.constant 0 : index
    %159 = vector.load %arg14[%c0_100, %c0_101, %c0_102] : memref<1x1x128xf32, #tpu.memory_space<vmem>>, vector<1x1x128xf32>
    %160 = vector.shape_cast %159 : vector<1x1x128xf32> to vector<1x128xf32>
    %c0_103 = arith.constant 0 : index
    %c0_104 = arith.constant 0 : index
    %c0_105 = arith.constant 0 : index
    %161 = vector.load %arg15[%c0_103, %c0_104, %c0_105] : memref<1x1x128xf32, #tpu.memory_space<vmem>>, vector<1x1x128xf32>
    %162 = vector.shape_cast %161 : vector<1x1x128xf32> to vector<1x128xf32>
    %cst_106 = arith.constant dense<0.000000e+00> : vector<8xf32>
    %163 = vector.multi_reduction <add>, %158, %cst_106 [1] : vector<8x128xf32> to vector<8xf32>
    %164 = vector.shape_cast %163 : vector<8xf32> to vector<8x1xf32>
    %cst_107 = arith.constant 1.280000e+02 : f32
    %165 = vector.broadcast %cst_107 : f32 to vector<8x1xf32>
    %166 = arith.divf %164, %165 : vector<8x1xf32>
    %167 = vector.broadcast %166 : vector<8x1xf32> to vector<8x128xf32>
    %168 = arith.subf %158, %167 : vector<8x128xf32>
    %169 = arith.mulf %168, %168 : vector<8x128xf32>
    %cst_108 = arith.constant dense<0.000000e+00> : vector<8xf32>
    %170 = vector.multi_reduction <add>, %169, %cst_108 [1] : vector<8x128xf32> to vector<8xf32>
    %171 = vector.shape_cast %170 : vector<8xf32> to vector<8x1xf32>
    %cst_109 = arith.constant 1.280000e+02 : f32
    %172 = vector.broadcast %cst_109 : f32 to vector<8x1xf32>
    %173 = arith.divf %171, %172 : vector<8x1xf32>
    %174 = vector.broadcast %166 : vector<8x1xf32> to vector<8x128xf32>
    %175 = arith.subf %158, %174 : vector<8x128xf32>
    %cst_110 = arith.constant 9.99999996E-13 : f32
    %176 = vector.broadcast %cst_110 : f32 to vector<8x1xf32>
    %177 = arith.addf %173, %176 : vector<8x1xf32>
    %178 = math.rsqrt %177 : vector<8x1xf32>
    %179 = vector.broadcast %178 : vector<8x1xf32> to vector<8x128xf32>
    %180 = arith.mulf %175, %179 : vector<8x128xf32>
    %181 = vector.broadcast %160 : vector<1x128xf32> to vector<8x128xf32>
    %182 = arith.mulf %180, %181 : vector<8x128xf32>
    %183 = vector.broadcast %162 : vector<1x128xf32> to vector<8x128xf32>
    %184 = arith.addf %182, %183 : vector<8x128xf32>
    %c0_111 = arith.constant 0 : index
    %c0_112 = arith.constant 0 : index
    %185 = vector.load %arg21[%c0_111, %c0_112] : memref<8x128xf32, #tpu.memory_space<vmem>>, vector<8x128xf32>
    tpu.vector_store %arg21[%c0_111, %c0_112], %184 {strides = array<i32>} : memref<8x128xf32, #tpu.memory_space<vmem>>, vector<8x128xf32>,
    %c1_i32 = arith.constant 1 : i32
    %186 = arith.cmpi eq, %arg1, %c1_i32 : i32
    %187 = arith.extui %186 : i1 to i32
    %c0_i32_113 = arith.constant 0 : i32
    %188 = arith.cmpi ne, %187, %c0_i32_113 : i32
    scf.if %188 {
      %189 = vector.extract_strided_slice %184 {offsets = [0, 0], sizes = [1, 128], strides = [1, 1]} : vector<8x128xf32> to vector<1x128xf32>
      %190 = arith.truncf %189 : vector<1x128xf32> to vector<1x128xbf16>
      %c0_114 = arith.constant 0 : index
      %c0_115 = arith.constant 0 : index
      %191 = vector.load %arg16[%c0_114, %c0_115] : memref<128x128xbf16, #tpu.memory_space<vmem>>, vector<128x128xbf16>
      %cst_116 = arith.constant dense<0.000000e+00> : vector<1x128xf32>
      %192 = tpu.matmul %190, %191, %cst_116 {dimension_numbers = #tpu.dot_dimension_numbers<[1], [0], [0], [1], [0, 0, 1, 1], [], []>} : vector<1x128xbf16>, vector<128x128xbf16>, vector<1x128xf32> -> vector<1x128xf32>
      %c0_117 = arith.constant 0 : index
      %c0_118 = arith.constant 0 : index
      %193 = vector.load %arg17[%c0_117, %c0_118] : memref<1x128xf32, #tpu.memory_space<vmem>>, vector<1x128xf32>
      %194 = arith.addf %192, %193 : vector<1x128xf32>
      %cst_119 = arith.constant 0.000000e+00 : f32
      %195 = vector.broadcast %cst_119 : f32 to vector<1x128xf32>
      %196 = arith.maximumf %194, %195 : vector<1x128xf32>
      %197 = arith.truncf %196 : vector<1x128xf32> to vector<1x128xbf16>
      %c0_120 = arith.constant 0 : index
      %c0_121 = arith.constant 0 : index
      %198 = vector.load %arg18[%c0_120, %c0_121] : memref<128x4xbf16, #tpu.memory_space<vmem>>, vector<128x4xbf16>
      %cst_122 = arith.constant dense<0.000000e+00> : vector<1x4xf32>
      %199 = tpu.matmul %197, %198, %cst_122 {dimension_numbers = #tpu.dot_dimension_numbers<[1], [0], [0], [1], [0, 0, 1, 1], [], []>} : vector<1x128xbf16>, vector<128x4xbf16>, vector<1x4xf32> -> vector<1x4xf32>
      %c0_123 = arith.constant 0 : index
      %c0_124 = arith.constant 0 : index
      %200 = vector.load %arg19[%c0_123, %c0_124] : memref<1x4xf32, #tpu.memory_space<vmem>>, vector<1x4xf32>
      %201 = arith.addf %199, %200 : vector<1x4xf32>
      %c0_125 = arith.constant 0 : index
      %c0_126 = arith.constant 0 : index
      %c0_127 = arith.constant 0 : index
      %202 = vector.load %arg20[%c0_125, %c0_126, %c0_127] : memref<1x1x4xf32, #tpu.memory_space<vmem>>, vector<1x1x4xf32>
      %203 = vector.shape_cast %202 : vector<1x1x4xf32> to vector<1x4xf32>
      %204 = vector.shape_cast %201 : vector<1x4xf32> to vector<1x1x4xf32>
      tpu.vector_store %arg20[%c0_125, %c0_126, %c0_127], %204 {strides = array<i32>} : memref<1x1x4xf32, #tpu.memory_space<vmem>>, vector<1x1x4xf32>,
    } else {
    }
    return
  }
  func.func @transform_0(%arg0: i32, %arg1: i32) -> (i32, i32, i32) {
    %c0_i32 = arith.constant 0 : i32
    %c0_i32_0 = arith.constant 0 : i32
    %c0_i32_1 = arith.constant 0 : i32
    return %arg0, %c0_i32, %c0_i32_0 : i32, i32, i32
  }
  func.func @transform_1(%arg0: i32, %arg1: i32) -> (i32, i32, i32) {
    %c0_i32 = arith.constant 0 : i32
    %c0_i32_0 = arith.constant 0 : i32
    %c0_i32_1 = arith.constant 0 : i32
    return %arg0, %c0_i32, %c0_i32_0 : i32, i32, i32
  }
  func.func @transform_2(%arg0: i32, %arg1: i32) -> (i32, i32, i32, i32) {
    %c0_i32 = arith.constant 0 : i32
    %c0_i32_0 = arith.constant 0 : i32
    %c0_i32_1 = arith.constant 0 : i32
    %c0_i32_2 = arith.constant 0 : i32
    return %arg1, %c0_i32, %c0_i32_0, %c0_i32_1 : i32, i32, i32, i32
  }
  func.func @transform_3(%arg0: i32, %arg1: i32) -> (i32, i32, i32) {
    %c0_i32 = arith.constant 0 : i32
    %c0_i32_0 = arith.constant 0 : i32
    %c0_i32_1 = arith.constant 0 : i32
    return %arg1, %c0_i32, %c0_i32_0 : i32, i32, i32
  }
  func.func @transform_4(%arg0: i32, %arg1: i32) -> (i32, i32, i32, i32) {
    %c0_i32 = arith.constant 0 : i32
    %c0_i32_0 = arith.constant 0 : i32
    %c0_i32_1 = arith.constant 0 : i32
    %c0_i32_2 = arith.constant 0 : i32
    return %arg1, %c0_i32, %c0_i32_0, %c0_i32_1 : i32, i32, i32, i32
  }
  func.func @transform_5(%arg0: i32, %arg1: i32) -> (i32, i32, i32) {
    %c0_i32 = arith.constant 0 : i32
    %c0_i32_0 = arith.constant 0 : i32
    %c0_i32_1 = arith.constant 0 : i32
    return %arg1, %c0_i32, %c0_i32_0 : i32, i32, i32
  }
  func.func @transform_6(%arg0: i32, %arg1: i32) -> (i32, i32, i32) {
    %c0_i32 = arith.constant 0 : i32
    %c0_i32_0 = arith.constant 0 : i32
    %c0_i32_1 = arith.constant 0 : i32
    return %arg1, %c0_i32, %c0_i32_0 : i32, i32, i32
  }
  func.func @transform_7(%arg0: i32, %arg1: i32) -> (i32, i32, i32) {
    %c0_i32 = arith.constant 0 : i32
    %c0_i32_0 = arith.constant 0 : i32
    %c0_i32_1 = arith.constant 0 : i32
    return %arg1, %c0_i32, %c0_i32_0 : i32, i32, i32
  }
  func.func @transform_8(%arg0: i32, %arg1: i32) -> (i32, i32, i32) {
    %c0_i32 = arith.constant 0 : i32
    %c0_i32_0 = arith.constant 0 : i32
    %c0_i32_1 = arith.constant 0 : i32
    return %arg1, %c0_i32, %c0_i32_0 : i32, i32, i32
  }
  func.func @transform_9(%arg0: i32, %arg1: i32) -> (i32, i32, i32) {
    %c0_i32 = arith.constant 0 : i32
    %c0_i32_0 = arith.constant 0 : i32
    %c0_i32_1 = arith.constant 0 : i32
    return %arg1, %c0_i32, %c0_i32_0 : i32, i32, i32
  }
  func.func @transform_10(%arg0: i32, %arg1: i32) -> (i32, i32, i32) {
    %c0_i32 = arith.constant 0 : i32
    %c0_i32_0 = arith.constant 0 : i32
    %c0_i32_1 = arith.constant 0 : i32
    return %arg1, %c0_i32, %c0_i32_0 : i32, i32, i32
  }
  func.func @transform_11(%arg0: i32, %arg1: i32) -> (i32, i32, i32) {
    %c0_i32 = arith.constant 0 : i32
    %c0_i32_0 = arith.constant 0 : i32
    %c0_i32_1 = arith.constant 0 : i32
    return %arg1, %c0_i32, %c0_i32_0 : i32, i32, i32
  }
  func.func @transform_12(%arg0: i32, %arg1: i32) -> (i32, i32, i32) {
    %c0_i32 = arith.constant 0 : i32
    %c0_i32_0 = arith.constant 0 : i32
    %c0_i32_1 = arith.constant 0 : i32
    return %arg1, %c0_i32, %c0_i32_0 : i32, i32, i32
  }
  func.func @transform_13(%arg0: i32, %arg1: i32) -> (i32, i32, i32) {
    %c0_i32 = arith.constant 0 : i32
    %c0_i32_0 = arith.constant 0 : i32
    %c0_i32_1 = arith.constant 0 : i32
    return %arg1, %c0_i32, %c0_i32_0 : i32, i32, i32
  }
  func.func @transform_14(%arg0: i32, %arg1: i32) -> (i32, i32) {
    %c0_i32 = arith.constant 0 : i32
    %c0_i32_0 = arith.constant 0 : i32
    %c0_i32_1 = arith.constant 0 : i32
    return %c0_i32, %c0_i32_0 : i32, i32
  }
  func.func @transform_15(%arg0: i32, %arg1: i32) -> (i32, i32) {
    %c0_i32 = arith.constant 0 : i32
    %c0_i32_0 = arith.constant 0 : i32
    %c0_i32_1 = arith.constant 0 : i32
    return %c0_i32, %c0_i32_0 : i32, i32
  }
  func.func @transform_16(%arg0: i32, %arg1: i32) -> (i32, i32) {
    %c0_i32 = arith.constant 0 : i32
    %c0_i32_0 = arith.constant 0 : i32
    %c0_i32_1 = arith.constant 0 : i32
    return %c0_i32, %c0_i32_0 : i32, i32
  }
  func.func @transform_17(%arg0: i32, %arg1: i32) -> (i32, i32) {
    %c0_i32 = arith.constant 0 : i32
    %c0_i32_0 = arith.constant 0 : i32
    %c0_i32_1 = arith.constant 0 : i32
    return %c0_i32, %c0_i32_0 : i32, i32
  }
  func.func @transform_18(%arg0: i32, %arg1: i32) -> (i32, i32, i32) {
    %c0_i32 = arith.constant 0 : i32
    %c0_i32_0 = arith.constant 0 : i32
    %c0_i32_1 = arith.constant 0 : i32
    return %arg0, %c0_i32, %c0_i32_0 : i32, i32, i32
  }
}

</mosaic_0001>

<llo_original>
// kernel: _lambda_.1
$region0: #{_lambda_.1}
  #allocation0 [shape = 'u32[]', space=smem, size = 0x4, offset = 0x4, fixed_abs, tag = 'smem constant byte address 0x4 - core index']
  #allocation1 [shape = 'u32[72,128]{1,0:T(1,128)}', space=vmem, size = 0x9000, scoped, tag = 'internal scratch']
  #allocation2 [shape = 'f32[8,128]{1,0:T(8,128)}', space=vmem, size = 0x1000, scoped, tag = 'scratch operand']
  %s0 = inlined_call_operand.vmem [shape: f32[2,8,128], index: 0, kind: input, shape index: {}]
  %s1 = inlined_call_operand.vmem [shape: f32[2,1,8], index: 1, kind: input, shape index: {}]
  %s2 = inlined_call_operand.vmem [shape: bf16[2,6,128,64], index: 2, kind: input, shape index: {}]
  %s3 = inlined_call_operand.vmem [shape: f32[2,6,64], index: 3, kind: input, shape index: {}]
  %s4 = inlined_call_operand.vmem [shape: bf16[2,2,64,128], index: 4, kind: input, shape index: {}]
  %s5 = inlined_call_operand.vmem [shape: f32[2,1,128], index: 5, kind: input, shape index: {}]
  %s6 = inlined_call_operand.vmem [shape: f32[2,1,128], index: 6, kind: input, shape index: {}]
  %s7 = inlined_call_operand.vmem [shape: f32[2,1,128], index: 7, kind: input, shape index: {}]
  %s8 = inlined_call_operand.vmem [shape: bf16[2,128,256], index: 8, kind: input, shape index: {}]
  %s9 = inlined_call_operand.vmem [shape: f32[2,1,256], index: 9, kind: input, shape index: {}]
  %s10 = inlined_call_operand.vmem [shape: bf16[2,256,128], index: 10, kind: input, shape index: {}]
  %s11 = inlined_call_operand.vmem [shape: f32[2,1,128], index: 11, kind: input, shape index: {}]
  %s12 = inlined_call_operand.vmem [shape: f32[2,1,128], index: 12, kind: input, shape index: {}]
  %s13 = inlined_call_operand.vmem [shape: f32[2,1,128], index: 13, kind: input, shape index: {}]
  %s14 = inlined_call_operand.vmem [shape: bf16[128,128], index: 14, kind: input, shape index: {}]
  %s15 = inlined_call_operand.vmem [shape: f32[1,128], index: 15, kind: input, shape index: {}]
  %s16 = inlined_call_operand.vmem [shape: bf16[128,4], index: 16, kind: input, shape index: {}]
  %s17 = inlined_call_operand.vmem [shape: f32[1,4], index: 17, kind: input, shape index: {}]
  %s18 = inlined_call_operand.hbm [shape: f32[2,1,4], index: 18, kind: output, shape index: {}]
  %s19 = sld [smem:[#allocation0]]
  $region113: #{_lambda_.1} parent=0
    _
  %s21 = ssub.s32 1, %s19
  %s22 = scalar_select 0, %s21, %s19
  $region1: #{_lambda_.1} parent=0
    #allocation3 [shape = 'u8[1024]{0}', space=vmem, size = 0x400, scoped, tag = 'output window, operand 0']
    #allocation4 [shape = 's32[2]{0}', space=sflag, size = 0x8, scoped, tag = 'scoped memory for _lambda_.1']
    %23 = vsyncpa [#allocation4], 0
    %s24 = scalar_lea.sflag [#allocation4], 1
    %25 = vsyncpa %s24, 0
    loop: start=0, step=1, limit=6
    $region2: #{_lambda_.1} parent=1 // loop_pre_header
      _
    $region3: #{_lambda_.1} parent=1 // loop_header
      %s27 = sphi 0, %s31
      %p28 = scmp.ge.s32.totalorder %s27, 6
      %s34 = sphi 0, %s46
      %s35 = sphi 0, %s42
      %s36 = sphi 0, %s34
      %s37 = sphi 0, %s35
      %s38 = sphi 0, %s36
      %s39 = sphi 0, %s37
      %s49 = sphi 0, %s51
      %s52 = sphi 0, %s49
      %s53 = sphi 0, %s52
      %s69 = sphi 0, %s53
      %s75 = sphi 0, %s77
      %s78 = sphi 0, %s75
      %s79 = sphi 0, %s78
      %s95 = sphi 0, %s79
      %s101 = sphi 0, %s103
      %s104 = sphi 0, %s101
      %s105 = sphi 0, %s104
      %s121 = sphi 0, %s105
      %s127 = sphi 0, %s129
      %s130 = sphi 0, %s127
      %s131 = sphi 0, %s130
      %s147 = sphi 0, %s131
      %s153 = sphi 0, %s155
      %s156 = sphi 0, %s153
      %s157 = sphi 0, %s156
      %s173 = sphi 0, %s157
      %s179 = sphi 0, %s181
      %s182 = sphi 0, %s179
      %s183 = sphi 0, %s182
      %s199 = sphi 0, %s183
      %s205 = sphi 0, %s207
      %s208 = sphi 0, %s205
      %s209 = sphi 0, %s208
      %s225 = sphi 0, %s209
      %s231 = sphi 0, %s233
      %s234 = sphi 0, %s231
      %s235 = sphi 0, %s234
      %s251 = sphi 0, %s235
      %s257 = sphi 0, %s259
      %s260 = sphi 0, %s257
      %s261 = sphi 0, %s260
      %s277 = sphi 0, %s261
      %s283 = sphi 0, %s285
      %s286 = sphi 0, %s283
      %s287 = sphi 0, %s286
      %s303 = sphi 0, %s287
      %s309 = sphi 0, %s311
      %s312 = sphi 0, %s309
      %s313 = sphi 0, %s312
      %s329 = sphi 0, %s313
      %s335 = sphi 0, %s337
      %s338 = sphi 0, %s335
      %s339 = sphi 0, %s338
      %s355 = sphi 0, %s339
      %s361 = sphi 0, %s363
      %s364 = sphi 0, %s361
      %s365 = sphi 0, %s364
      %s381 = sphi 0, %s365
      %s387 = sphi 0, %s389
      %s390 = sphi 0, %s387
      %s391 = sphi 0, %s390
      %s407 = sphi 0, %s391
      %s411 = sphi 0, %s411
      %s413 = sphi 0, %s411
      %s414 = sphi 0, %s413
      %s428 = sphi 0, %s414
      %s432 = sphi 0, %s432
      %s434 = sphi 0, %s432
      %s435 = sphi 0, %s434
      %s449 = sphi 0, %s435
      %s453 = sphi 0, %s453
      %s455 = sphi 0, %s453
      %s456 = sphi 0, %s455
      %s470 = sphi 0, %s456
      %s474 = sphi 0, %s474
      %s476 = sphi 0, %s474
      %s477 = sphi 0, %s476
      %s491 = sphi 0, %s477
      %s497 = sphi 0, %s499
      %s500 = sphi 0, %s497
      %s501 = sphi 0, %s500
      %s517 = sphi 0, %s501
    $region4: #{_lambda_.1} parent=1 // loop_header_branch
      %30 = sbr.rel (%p28) target = $region8
    $region5: #{_lambda_.1} parent=1 // loop_body
      %s32 = ssub.s32 %s27, 1
      %s33 = ssub.s32 %s27, 2
      %s40 = sadd.s32 1, %s35
      %p41 = scmp.ge.s32.totalorder %s40, 2
      %s42 = scalar_select %p41, 0, %s40
      %s43 = sadd.s32 1, %s34
      %s44 = scalar_select %p41, %s43, %s34
      %p45 = scmp.ge.s32.totalorder %s44, 2
      %s46 = scalar_select %p45, 0, %s44
      %s47 = ssub.s32 %s34, %s46
      %p48 = scmp.eq.s32.totalorder %s47, 0
      %s50 = sadd.s32 %s49, 1
      %s51 = scalar_select %p48, %s49, %s50
      %p54 = pneg %p48
      %p55 = scmp.eq.s32.totalorder %s27, 3
      %p56 = por %p54, %p55
      %p57 = scmp.ne.s32.totalorder %s49, %s52
      %p58 = scmp.eq.s32.totalorder %s27, 0
      %p59 = por %p57, %p58
      %p60 = scmp.ne.s32.totalorder %s49, %s52
      %p61 = scmp.eq.s32.totalorder %s32, 3
      %p62 = por %p60, %p61
      %p63 = scmp.ne.s32.totalorder %s52, %s53
      %p64 = scmp.eq.s32.totalorder %s32, 0
      %p65 = por %p63, %p64
      %p66 = scmp.ne.s32.totalorder %s52, %s53
      %p67 = scmp.eq.s32.totalorder %s33, 3
      %p68 = por %p66, %p67
      %p70 = scmp.ne.s32.totalorder %s53, %s69
      %p71 = scmp.eq.s32.totalorder %s33, 0
      %p72 = por %p70, %p71
      %s73 = ssub.s32 %s34, %s46
      %p74 = scmp.eq.s32.totalorder %s73, 0
      %s76 = sadd.s32 %s75, 1
      %s77 = scalar_select %p74, %s75, %s76
      %p80 = pneg %p74
      %p81 = scmp.eq.s32.totalorder %s27, 3
      %p82 = por %p80, %p81
      %p83 = scmp.ne.s32.totalorder %s75, %s78
      %p84 = scmp.eq.s32.totalorder %s27, 0
      %p85 = por %p83, %p84
      %p86 = scmp.ne.s32.totalorder %s75, %s78
      %p87 = scmp.eq.s32.totalorder %s32, 3
      %p88 = por %p86, %p87
      %p89 = scmp.ne.s32.totalorder %s78, %s79
      %p90 = scmp.eq.s32.totalorder %s32, 0
      %p91 = por %p89, %p90
      %p92 = scmp.ne.s32.totalorder %s78, %s79
      %p93 = scmp.eq.s32.totalorder %s33, 3
      %p94 = por %p92, %p93
      %p96 = scmp.ne.s32.totalorder %s79, %s95
      %p97 = scmp.eq.s32.totalorder %s33, 0
      %p98 = por %p96, %p97
      %s99 = ssub.s32 %s35, %s42
      %p100 = scmp.eq.s32.totalorder %s99, 0
      %s102 = sadd.s32 %s101, 1
      %s103 = scalar_select %p100, %s101, %s102
      %p106 = pneg %p100
      %p107 = scmp.eq.s32.totalorder %s27, 3
      %p108 = por %p106, %p107
      %p109 = scmp.ne.s32.totalorder %s101, %s104
      %p110 = scmp.eq.s32.totalorder %s27, 0
      %p111 = por %p109, %p110
      %p112 = scmp.ne.s32.totalorder %s101, %s104
      %p113 = scmp.eq.s32.totalorder %s32, 3
      %p114 = por %p112, %p113
      %p115 = scmp.ne.s32.totalorder %s104, %s105
      %p116 = scmp.eq.s32.totalorder %s32, 0
      %p117 = por %p115, %p116
      %p118 = scmp.ne.s32.totalorder %s104, %s105
      %p119 = scmp.eq.s32.totalorder %s33, 3
      %p120 = por %p118, %p119
      %p122 = scmp.ne.s32.totalorder %s105, %s121
      %p123 = scmp.eq.s32.totalorder %s33, 0
      %p124 = por %p122, %p123
      %s125 = ssub.s32 %s35, %s42
      %p126 = scmp.eq.s32.totalorder %s125, 0
      %s128 = sadd.s32 %s127, 1
      %s129 = scalar_select %p126, %s127, %s128
      %p132 = pneg %p126
      %p133 = scmp.eq.s32.totalorder %s27, 3
      %p134 = por %p132, %p133
      %p135 = scmp.ne.s32.totalorder %s127, %s130
      %p136 = scmp.eq.s32.totalorder %s27, 0
      %p137 = por %p135, %p136
      %p138 = scmp.ne.s32.totalorder %s127, %s130
      %p139 = scmp.eq.s32.totalorder %s32, 3
      %p140 = por %p138, %p139
      %p141 = scmp.ne.s32.totalorder %s130, %s131
      %p142 = scmp.eq.s32.totalorder %s32, 0
      %p143 = por %p141, %p142
      %p144 = scmp.ne.s32.totalorder %s130, %s131
      %p145 = scmp.eq.s32.totalorder %s33, 3
      %p146 = por %p144, %p145
      %p148 = scmp.ne.s32.totalorder %s131, %s147
      %p149 = scmp.eq.s32.totalorder %s33, 0
      %p150 = por %p148, %p149
      %s151 = ssub.s32 %s35, %s42
      %p152 = scmp.eq.s32.totalorder %s151, 0
      %s154 = sadd.s32 %s153, 1
      %s155 = scalar_select %p152, %s153, %s154
      %p158 = pneg %p152
      %p159 = scmp.eq.s32.totalorder %s27, 3
      %p160 = por %p158, %p159
      %p161 = scmp.ne.s32.totalorder %s153, %s156
      %p162 = scmp.eq.s32.totalorder %s27, 0
      %p163 = por %p161, %p162
      %p164 = scmp.ne.s32.totalorder %s153, %s156
      %p165 = scmp.eq.s32.totalorder %s32, 3
      %p166 = por %p164, %p165
      %p167 = scmp.ne.s32.totalorder %s156, %s157
      %p168 = scmp.eq.s32.totalorder %s32, 0
      %p169 = por %p167, %p168
      %p170 = scmp.ne.s32.totalorder %s156, %s157
      %p171 = scmp.eq.s32.totalorder %s33, 3
      %p172 = por %p170, %p171
      %p174 = scmp.ne.s32.totalorder %s157, %s173
      %p175 = scmp.eq.s32.totalorder %s33, 0
      %p176 = por %p174, %p175
      %s177 = ssub.s32 %s35, %s42
      %p178 = scmp.eq.s32.totalorder %s177, 0
      %s180 = sadd.s32 %s179, 1
      %s181 = scalar_select %p178, %s179, %s180
      %p184 = pneg %p178
      %p185 = scmp.eq.s32.totalorder %s27, 3
      %p186 = por %p184, %p185
      %p187 = scmp.ne.s32.totalorder %s179, %s182
      %p188 = scmp.eq.s32.totalorder %s27, 0
      %p189 = por %p187, %p188
      %p190 = scmp.ne.s32.totalorder %s179, %s182
      %p191 = scmp.eq.s32.totalorder %s32, 3
      %p192 = por %p190, %p191
      %p193 = scmp.ne.s32.totalorder %s182, %s183
      %p194 = scmp.eq.s32.totalorder %s32, 0
      %p195 = por %p193, %p194
      %p196 = scmp.ne.s32.totalorder %s182, %s183
      %p197 = scmp.eq.s32.totalorder %s33, 3
      %p198 = por %p196, %p197
      %p200 = scmp.ne.s32.totalorder %s183, %s199
      %p201 = scmp.eq.s32.totalorder %s33, 0
      %p202 = por %p200, %p201
      %s203 = ssub.s32 %s35, %s42
      %p204 = scmp.eq.s32.totalorder %s203, 0
      %s206 = sadd.s32 %s205, 1
      %s207 = scalar_select %p204, %s205, %s206
      %p210 = pneg %p204
      %p211 = scmp.eq.s32.totalorder %s27, 3
      %p212 = por %p210, %p211
      %p213 = scmp.ne.s32.totalorder %s205, %s208
      %p214 = scmp.eq.s32.totalorder %s27, 0
      %p215 = por %p213, %p214
      %p216 = scmp.ne.s32.totalorder %s205, %s208
      %p217 = scmp.eq.s32.totalorder %s32, 3
      %p218 = por %p216, %p217
      %p219 = scmp.ne.s32.totalorder %s208, %s209
      %p220 = scmp.eq.s32.totalorder %s32, 0
      %p221 = por %p219, %p220
      %p222 = scmp.ne.s32.totalorder %s208, %s209
      %p223 = scmp.eq.s32.totalorder %s33, 3
      %p224 = por %p222, %p223
      %p226 = scmp.ne.s32.totalorder %s209, %s225
      %p227 = scmp.eq.s32.totalorder %s33, 0
      %p228 = por %p226, %p227
      %s229 = ssub.s32 %s35, %s42
      %p230 = scmp.eq.s32.totalorder %s229, 0
      %s232 = sadd.s32 %s231, 1
      %s233 = scalar_select %p230, %s231, %s232
      %p236 = pneg %p230
      %p237 = scmp.eq.s32.totalorder %s27, 3
      %p238 = por %p236, %p237
      %p239 = scmp.ne.s32.totalorder %s231, %s234
      %p240 = scmp.eq.s32.totalorder %s27, 0
      %p241 = por %p239, %p240
      %p242 = scmp.ne.s32.totalorder %s231, %s234
      %p243 = scmp.eq.s32.totalorder %s32, 3
      %p244 = por %p242, %p243
      %p245 = scmp.ne.s32.totalorder %s234, %s235
      %p246 = scmp.eq.s32.totalorder %s32, 0
      %p247 = por %p245, %p246
      %p248 = scmp.ne.s32.totalorder %s234, %s235
      %p249 = scmp.eq.s32.totalorder %s33, 3
      %p250 = por %p248, %p249
      %p252 = scmp.ne.s32.totalorder %s235, %s251
      %p253 = scmp.eq.s32.totalorder %s33, 0
      %p254 = por %p252, %p253
      %s255 = ssub.s32 %s35, %s42
      %p256 = scmp.eq.s32.totalorder %s255, 0
      %s258 = sadd.s32 %s257, 1
      %s259 = scalar_select %p256, %s257, %s258
      %p262 = pneg %p256
      %p263 = scmp.eq.s32.totalorder %s27, 3
      %p264 = por %p262, %p263
      %p265 = scmp.ne.s32.totalorder %s257, %s260
      %p266 = scmp.eq.s32.totalorder %s27, 0
      %p267 = por %p265, %p266
      %p268 = scmp.ne.s32.totalorder %s257, %s260
      %p269 = scmp.eq.s32.totalorder %s32, 3
      %p270 = por %p268, %p269
      %p271 = scmp.ne.s32.totalorder %s260, %s261
      %p272 = scmp.eq.s32.totalorder %s32, 0
      %p273 = por %p271, %p272
      %p274 = scmp.ne.s32.totalorder %s260, %s261
      %p275 = scmp.eq.s32.totalorder %s33, 3
      %p276 = por %p274, %p275
      %p278 = scmp.ne.s32.totalorder %s261, %s277
      %p279 = scmp.eq.s32.totalorder %s33, 0
      %p280 = por %p278, %p279
      %s281 = ssub.s32 %s35, %s42
      %p282 = scmp.eq.s32.totalorder %s281, 0
      %s284 = sadd.s32 %s283, 1
      %s285 = scalar_select %p282, %s283, %s284
      %p288 = pneg %p282
      %p289 = scmp.eq.s32.totalorder %s27, 3
      %p290 = por %p288, %p289
      %p291 = scmp.ne.s32.totalorder %s283, %s286
      %p292 = scmp.eq.s32.totalorder %s27, 0
      %p293 = por %p291, %p292
      %p294 = scmp.ne.s32.totalorder %s283, %s286
      %p295 = scmp.eq.s32.totalorder %s32, 3
      %p296 = por %p294, %p295
      %p297 = scmp.ne.s32.totalorder %s286, %s287
      %p298 = scmp.eq.s32.totalorder %s32, 0
      %p299 = por %p297, %p298
      %p300 = scmp.ne.s32.totalorder %s286, %s287
      %p301 = scmp.eq.s32.totalorder %s33, 3
      %p302 = por %p300, %p301
      %p304 = scmp.ne.s32.totalorder %s287, %s303
      %p305 = scmp.eq.s32.totalorder %s33, 0
      %p306 = por %p304, %p305
      %s307 = ssub.s32 %s35, %s42
      %p308 = scmp.eq.s32.totalorder %s307, 0
      %s310 = sadd.s32 %s309, 1
      %s311 = scalar_select %p308, %s309, %s310
      %p314 = pneg %p308
      %p315 = scmp.eq.s32.totalorder %s27, 3
      %p316 = por %p314, %p315
      %p317 = scmp.ne.s32.totalorder %s309, %s312
      %p318 = scmp.eq.s32.totalorder %s27, 0
      %p319 = por %p317, %p318
      %p320 = scmp.ne.s32.totalorder %s309, %s312
      %p321 = scmp.eq.s32.totalorder %s32, 3
      %p322 = por %p320, %p321
      %p323 = scmp.ne.s32.totalorder %s312, %s313
      %p324 = scmp.eq.s32.totalorder %s32, 0
      %p325 = por %p323, %p324
      %p326 = scmp.ne.s32.totalorder %s312, %s313
      %p327 = scmp.eq.s32.totalorder %s33, 3
      %p328 = por %p326, %p327
      %p330 = scmp.ne.s32.totalorder %s313, %s329
      %p331 = scmp.eq.s32.totalorder %s33, 0
      %p332 = por %p330, %p331
      %s333 = ssub.s32 %s35, %s42
      %p334 = scmp.eq.s32.totalorder %s333, 0
      %s336 = sadd.s32 %s335, 1
      %s337 = scalar_select %p334, %s335, %s336
      %p340 = pneg %p334
      %p341 = scmp.eq.s32.totalorder %s27, 3
      %p342 = por %p340, %p341
      %p343 = scmp.ne.s32.totalorder %s335, %s338
      %p344 = scmp.eq.s32.totalorder %s27, 0
      %p345 = por %p343, %p344
      %p346 = scmp.ne.s32.totalorder %s335, %s338
      %p347 = scmp.eq.s32.totalorder %s32, 3
      %p348 = por %p346, %p347
      %p349 = scmp.ne.s32.totalorder %s338, %s339
      %p350 = scmp.eq.s32.totalorder %s32, 0
      %p351 = por %p349, %p350
      %p352 = scmp.ne.s32.totalorder %s338, %s339
      %p353 = scmp.eq.s32.totalorder %s33, 3
      %p354 = por %p352, %p353
      %p356 = scmp.ne.s32.totalorder %s339, %s355
      %p357 = scmp.eq.s32.totalorder %s33, 0
      %p358 = por %p356, %p357
      %s359 = ssub.s32 %s35, %s42
      %p360 = scmp.eq.s32.totalorder %s359, 0
      %s362 = sadd.s32 %s361, 1
      %s363 = scalar_select %p360, %s361, %s362
      %p366 = pneg %p360
      %p367 = scmp.eq.s32.totalorder %s27, 3
      %p368 = por %p366, %p367
      %p369 = scmp.ne.s32.totalorder %s361, %s364
      %p370 = scmp.eq.s32.totalorder %s27, 0
      %p371 = por %p369, %p370
      %p372 = scmp.ne.s32.totalorder %s361, %s364
      %p373 = scmp.eq.s32.totalorder %s32, 3
      %p374 = por %p372, %p373
      %p375 = scmp.ne.s32.totalorder %s364, %s365
      %p376 = scmp.eq.s32.totalorder %s32, 0
      %p377 = por %p375, %p376
      %p378 = scmp.ne.s32.totalorder %s364, %s365
      %p379 = scmp.eq.s32.totalorder %s33, 3
      %p380 = por %p378, %p379
      %p382 = scmp.ne.s32.totalorder %s365, %s381
      %p383 = scmp.eq.s32.totalorder %s33, 0
      %p384 = por %p382, %p383
      %s385 = ssub.s32 %s35, %s42
      %p386 = scmp.eq.s32.totalorder %s385, 0
      %s388 = sadd.s32 %s387, 1
      %s389 = scalar_select %p386, %s387, %s388
      %p392 = pneg %p386
      %p393 = scmp.eq.s32.totalorder %s27, 3
      %p394 = por %p392, %p393
      %p395 = scmp.ne.s32.totalorder %s387, %s390
      %p396 = scmp.eq.s32.totalorder %s27, 0
      %p397 = por %p395, %p396
      %p398 = scmp.ne.s32.totalorder %s387, %s390
      %p399 = scmp.eq.s32.totalorder %s32, 3
      %p400 = por %p398, %p399
      %p401 = scmp.ne.s32.totalorder %s390, %s391
      %p402 = scmp.eq.s32.totalorder %s32, 0
      %p403 = por %p401, %p402
      %p404 = scmp.ne.s32.totalorder %s390, %s391
      %p405 = scmp.eq.s32.totalorder %s33, 3
      %p406 = por %p404, %p405
      %p408 = scmp.ne.s32.totalorder %s391, %s407
      %p409 = scmp.eq.s32.totalorder %s33, 0
      %p410 = por %p408, %p409
      %s412 = sadd.s32 %s411, 1
      %p415 = scmp.eq.s32.totalorder %s27, 3
      %p416 = scmp.ne.s32.totalorder %s411, %s413
      %p417 = scmp.eq.s32.totalorder %s27, 0
      %p418 = por %p416, %p417
      %p419 = scmp.ne.s32.totalorder %s411, %s413
      %p420 = scmp.eq.s32.totalorder %s32, 3
      %p421 = por %p419, %p420
      %p422 = scmp.ne.s32.totalorder %s413, %s414
      %p423 = scmp.eq.s32.totalorder %s32, 0
      %p424 = por %p422, %p423
      %p425 = scmp.ne.s32.totalorder %s413, %s414
      %p426 = scmp.eq.s32.totalorder %s33, 3
      %p427 = por %p425, %p426
      %p429 = scmp.ne.s32.totalorder %s414, %s428
      %p430 = scmp.eq.s32.totalorder %s33, 0
      %p431 = por %p429, %p430
      %s433 = sadd.s32 %s432, 1
      %p436 = scmp.eq.s32.totalorder %s27, 3
      %p437 = scmp.ne.s32.totalorder %s432, %s434
      %p438 = scmp.eq.s32.totalorder %s27, 0
      %p439 = por %p437, %p438
      %p440 = scmp.ne.s32.totalorder %s432, %s434
      %p441 = scmp.eq.s32.totalorder %s32, 3
      %p442 = por %p440, %p441
      %p443 = scmp.ne.s32.totalorder %s434, %s435
      %p444 = scmp.eq.s32.totalorder %s32, 0
      %p445 = por %p443, %p444
      %p446 = scmp.ne.s32.totalorder %s434, %s435
      %p447 = scmp.eq.s32.totalorder %s33, 3
      %p448 = por %p446, %p447
      %p450 = scmp.ne.s32.totalorder %s435, %s449
      %p451 = scmp.eq.s32.totalorder %s33, 0
      %p452 = por %p450, %p451
      %s454 = sadd.s32 %s453, 1
      %p457 = scmp.eq.s32.totalorder %s27, 3
      %p458 = scmp.ne.s32.totalorder %s453, %s455
      %p459 = scmp.eq.s32.totalorder %s27, 0
      %p460 = por %p458, %p459
      %p461 = scmp.ne.s32.totalorder %s453, %s455
      %p462 = scmp.eq.s32.totalorder %s32, 3
      %p463 = por %p461, %p462
      %p464 = scmp.ne.s32.totalorder %s455, %s456
      %p465 = scmp.eq.s32.totalorder %s32, 0
      %p466 = por %p464, %p465
      %p467 = scmp.ne.s32.totalorder %s455, %s456
      %p468 = scmp.eq.s32.totalorder %s33, 3
      %p469 = por %p467, %p468
      %p471 = scmp.ne.s32.totalorder %s456, %s470
      %p472 = scmp.eq.s32.totalorder %s33, 0
      %p473 = por %p471, %p472
      %s475 = sadd.s32 %s474, 1
      %p478 = scmp.eq.s32.totalorder %s27, 3
      %p479 = scmp.ne.s32.totalorder %s474, %s476
      %p480 = scmp.eq.s32.totalorder %s27, 0
      %p481 = por %p479, %p480
      %p482 = scmp.ne.s32.totalorder %s474, %s476
      %p483 = scmp.eq.s32.totalorder %s32, 3
      %p484 = por %p482, %p483
      %p485 = scmp.ne.s32.totalorder %s476, %s477
      %p486 = scmp.eq.s32.totalorder %s32, 0
      %p487 = por %p485, %p486
      %p488 = scmp.ne.s32.totalorder %s476, %s477
      %p489 = scmp.eq.s32.totalorder %s33, 3
      %p490 = por %p488, %p489
      %p492 = scmp.ne.s32.totalorder %s477, %s491
      %p493 = scmp.eq.s32.totalorder %s33, 0
      %p494 = por %p492, %p493
      %s495 = ssub.s32 %s34, %s46
      %p496 = scmp.eq.s32.totalorder %s495, 0
      %s498 = sadd.s32 %s497, 1
      %s499 = scalar_select %p496, %s497, %s498
      %p502 = pneg %p496
      %p503 = scmp.eq.s32.totalorder %s27, 3
      %p504 = por %p502, %p503
      %p505 = scmp.ne.s32.totalorder %s497, %s500
      %p506 = scmp.eq.s32.totalorder %s27, 0
      %p507 = por %p505, %p506
      %p508 = scmp.ne.s32.totalorder %s497, %s500
      %p509 = scmp.eq.s32.totalorder %s32, 3
      %p510 = por %p508, %p509
      %p511 = scmp.ne.s32.totalorder %s500, %s501
      %p512 = scmp.eq.s32.totalorder %s32, 0
      %p513 = por %p511, %p512
      %p514 = scmp.ne.s32.totalorder %s500, %s501
      %p515 = scmp.eq.s32.totalorder %s33, 3
      %p516 = por %p514, %p515
      %p518 = scmp.ne.s32.totalorder %s501, %s517
      %p519 = scmp.eq.s32.totalorder %s33, 0
      %p520 = por %p518, %p519
      %p521 = scmp.le.s32.totalorder 1, %s27
      %p522 = scmp.lt.s32.totalorder %s27, 5
      %p523 = pnand %p521, %p522
      %p524 = pneg %p523
      // Predicated region
      $region9: #{_lambda_.1} parent=5 // pred_check
        _
      $region10: #{_lambda_.1} parent=5 // pred_check_branch
        %526 = sbr.rel (%p523) target = $region12
      $region11: #{_lambda_.1} parent=5 // pred_region
        %s527 = ssub.s32 %s27, 1
        // Predicated region
        $region13: #{_lambda_.1} parent=11 // pred_check
          %p528 = pneg %p424
        $region14: #{_lambda_.1} parent=11 // pred_check_branch
          %530 = sbr.rel (%p528) target = $region16
        $region15: #{_lambda_.1} parent=11 // pred_region
          _
        $region16: #{_lambda_.1} parent=11 // pred_fallthru
          _
        // Predicated region
        $region17: #{_lambda_.1} parent=11 // pred_check
          %p531 = pneg %p445
        $region18: #{_lambda_.1} parent=11 // pred_check_branch
          %533 = sbr.rel (%p531) target = $region20
        $region19: #{_lambda_.1} parent=11 // pred_region
          _
        $region20: #{_lambda_.1} parent=11 // pred_fallthru
          _
        // Predicated region
        $region21: #{_lambda_.1} parent=11 // pred_check
          %p534 = pneg %p466
        $region22: #{_lambda_.1} parent=11 // pred_check_branch
          %536 = sbr.rel (%p534) target = $region24
        $region23: #{_lambda_.1} parent=11 // pred_region
          _
        $region24: #{_lambda_.1} parent=11 // pred_fallthru
          _
        // Predicated region
        $region25: #{_lambda_.1} parent=11 // pred_check
          %p537 = pneg %p487
        $region26: #{_lambda_.1} parent=11 // pred_check_branch
          %539 = sbr.rel (%p537) target = $region28
        $region27: #{_lambda_.1} parent=11 // pred_region
          _
        $region28: #{_lambda_.1} parent=11 // pred_fallthru
          _
      $region12: #{_lambda_.1} parent=5 // pred_fallthru
        _
      %p540 = scmp.lt.s32.totalorder %s27, 4
      // Predicated region
      $region29: #{_lambda_.1} parent=5 // pred_check
        %p541 = pneg %p540
      $region30: #{_lambda_.1} parent=5 // pred_check_branch
        %543 = sbr.rel (%p541) target = $region32
      $region31: #{_lambda_.1} parent=5 // pred_region
        // Predicated region
        $region33: #{_lambda_.1} parent=31 // pred_check
          %p544 = pneg %p59
        $region34: #{_lambda_.1} parent=31 // pred_check_branch
          %546 = sbr.rel (%p544) target = $region36
        $region35: #{_lambda_.1} parent=31 // pred_region
          %p547 = scmp.lt.s32.totalorder %s34, 1
          %s548 = scalar_select %p547, %s34, 1
          %s549 = smul.addr %s548, 8
          %s550 = scalar_lea.vmem %s0, %s549
        $region36: #{_lambda_.1} parent=31 // pred_fallthru
          _
        // Predicated region
        $region37: #{_lambda_.1} parent=31 // pred_check
          %p551 = pneg %p85
        $region38: #{_lambda_.1} parent=31 // pred_check_branch
          %553 = sbr.rel (%p551) target = $region40
        $region39: #{_lambda_.1} parent=31 // pred_region
          %p554 = scmp.lt.s32.totalorder %s34, 1
          %s555 = scalar_select %p554, %s34, 1
          %s556 = scalar_lea.vmem %s1, %s555
        $region40: #{_lambda_.1} parent=31 // pred_fallthru
          _
        // Predicated region
        $region41: #{_lambda_.1} parent=31 // pred_check
          %p557 = pneg %p111
        $region42: #{_lambda_.1} parent=31 // pred_check_branch
          %559 = sbr.rel (%p557) target = $region44
        $region43: #{_lambda_.1} parent=31 // pred_region
          %p560 = scmp.lt.s32.totalorder %s35, 1
          %s561 = scalar_select %p560, %s35, 1
          %s562 = smul.addr %s561, 96
          %s563 = smul.addr %s562, 4
          %s564 = scalar_lea.vmem %s2, %s563
        $region44: #{_lambda_.1} parent=31 // pred_fallthru
          _
        // Predicated region
        $region45: #{_lambda_.1} parent=31 // pred_check
          %p565 = pneg %p137
        $region46: #{_lambda_.1} parent=31 // pred_check_branch
          %567 = sbr.rel (%p565) target = $region48
        $region47: #{_lambda_.1} parent=31 // pred_region
          %p568 = scmp.lt.s32.totalorder %s35, 1
          %s569 = scalar_select %p568, %s35, 1
          %s570 = smul.addr %s569, 8
          %s571 = scalar_lea.vmem %s3, %s570
        $region48: #{_lambda_.1} parent=31 // pred_fallthru
          _
        // Predicated region
        $region49: #{_lambda_.1} parent=31 // pred_check
          %p572 = pneg %p163
        $region50: #{_lambda_.1} parent=31 // pred_check_branch
          %574 = sbr.rel (%p572) target = $region52
        $region51: #{_lambda_.1} parent=31 // pred_region
          %p575 = scmp.lt.s32.totalorder %s35, 1
          %s576 = scalar_select %p575, %s35, 1
          %s577 = smul.addr %s576, 16
          %s578 = smul.addr %s577, 4
          %s579 = scalar_lea.vmem %s4, %s578
        $region52: #{_lambda_.1} parent=31 // pred_fallthru
          _
        // Predicated region
        $region53: #{_lambda_.1} parent=31 // pred_check
          %p580 = pneg %p189
        $region54: #{_lambda_.1} parent=31 // pred_check_branch
          %582 = sbr.rel (%p580) target = $region56
        $region55: #{_lambda_.1} parent=31 // pred_region
          %p583 = scmp.lt.s32.totalorder %s35, 1
          %s584 = scalar_select %p583, %s35, 1
          %s585 = scalar_lea.vmem %s5, %s584
        $region56: #{_lambda_.1} parent=31 // pred_fallthru
          _
        // Predicated region
        $region57: #{_lambda_.1} parent=31 // pred_check
          %p586 = pneg %p215
        $region58: #{_lambda_.1} parent=31 // pred_check_branch
          %588 = sbr.rel (%p586) target = $region60
        $region59: #{_lambda_.1} parent=31 // pred_region
          %p589 = scmp.lt.s32.totalorder %s35, 1
          %s590 = scalar_select %p589, %s35, 1
          %s591 = scalar_lea.vmem %s6, %s590
        $region60: #{_lambda_.1} parent=31 // pred_fallthru
          _
        // Predicated region
        $region61: #{_lambda_.1} parent=31 // pred_check
          %p592 = pneg %p241
        $region62: #{_lambda_.1} parent=31 // pred_check_branch
          %594 = sbr.rel (%p592) target = $region64
        $region63: #{_lambda_.1} parent=31 // pred_region
          %p595 = scmp.lt.s32.totalorder %s35, 1
          %s596 = scalar_select %p595, %s35, 1
          %s597 = scalar_lea.vmem %s7, %s596
        $region64: #{_lambda_.1} parent=31 // pred_fallthru
          _
        // Predicated region
        $region65: #{_lambda_.1} parent=31 // pred_check
          %p598 = pneg %p267
        $region66: #{_lambda_.1} parent=31 // pred_check_branch
          %600 = sbr.rel (%p598) target = $region68
        $region67: #{_lambda_.1} parent=31 // pred_region
          %p601 = scmp.lt.s32.totalorder %s35, 1
          %s602 = scalar_select %p601, %s35, 1
          %s603 = smul.addr %s602, 32
          %s604 = smul.addr %s603, 4
          %s605 = scalar_lea.vmem %s8, %s604
        $region68: #{_lambda_.1} parent=31 // pred_fallthru
          _
        // Predicated region
        $region69: #{_lambda_.1} parent=31 // pred_check
          %p606 = pneg %p293
        $region70: #{_lambda_.1} parent=31 // pred_check_branch
          %608 = sbr.rel (%p606) target = $region72
        $region71: #{_lambda_.1} parent=31 // pred_region
          %p609 = scmp.lt.s32.totalorder %s35, 1
          %s610 = scalar_select %p609, %s35, 1
          %s611 = smul.addr %s610, 2
          %s612 = scalar_lea.vmem %s9, %s611
        $region72: #{_lambda_.1} parent=31 // pred_fallthru
          _
        // Predicated region
        $region73: #{_lambda_.1} parent=31 // pred_check
          %p613 = pneg %p319
        $region74: #{_lambda_.1} parent=31 // pred_check_branch
          %615 = sbr.rel (%p613) target = $region76
        $region75: #{_lambda_.1} parent=31 // pred_region
          %p616 = scmp.lt.s32.totalorder %s35, 1
          %s617 = scalar_select %p616, %s35, 1
          %s618 = smul.addr %s617, 32
          %s619 = smul.addr %s618, 4
          %s620 = scalar_lea.vmem %s10, %s619
        $region76: #{_lambda_.1} parent=31 // pred_fallthru
          _
        // Predicated region
        $region77: #{_lambda_.1} parent=31 // pred_check
          %p621 = pneg %p345
        $region78: #{_lambda_.1} parent=31 // pred_check_branch
          %623 = sbr.rel (%p621) target = $region80
        $region79: #{_lambda_.1} parent=31 // pred_region
          %p624 = scmp.lt.s32.totalorder %s35, 1
          %s625 = scalar_select %p624, %s35, 1
          %s626 = scalar_lea.vmem %s11, %s625
        $region80: #{_lambda_.1} parent=31 // pred_fallthru
          _
        // Predicated region
        $region81: #{_lambda_.1} parent=31 // pred_check
          %p627 = pneg %p371
        $region82: #{_lambda_.1} parent=31 // pred_check_branch
          %629 = sbr.rel (%p627) target = $region84
        $region83: #{_lambda_.1} parent=31 // pred_region
          %p630 = scmp.lt.s32.totalorder %s35, 1
          %s631 = scalar_select %p630, %s35, 1
          %s632 = scalar_lea.vmem %s12, %s631
        $region84: #{_lambda_.1} parent=31 // pred_fallthru
          _
        // Predicated region
        $region85: #{_lambda_.1} parent=31 // pred_check
          %p633 = pneg %p397
        $region86: #{_lambda_.1} parent=31 // pred_check_branch
          %635 = sbr.rel (%p633) target = $region88
        $region87: #{_lambda_.1} parent=31 // pred_region
          %p636 = scmp.lt.s32.totalorder %s35, 1
          %s637 = scalar_select %p636, %s35, 1
          %s638 = scalar_lea.vmem %s13, %s637
        $region88: #{_lambda_.1} parent=31 // pred_fallthru
          _
      $region32: #{_lambda_.1} parent=5 // pred_fallthru
        _
      %p639 = scmp.le.s32.totalorder 1, %s27
      %p640 = scmp.lt.s32.totalorder %s27, 5
      %p641 = pnand %p639, %p640
      %p642 = pneg %p641
      // Predicated region
      $region89: #{_lambda_.1} parent=5 // pred_check
        _
      $region90: #{_lambda_.1} parent=5 // pred_check_branch
        %644 = sbr.rel (%p641) target = $region92
      $region91: #{_lambda_.1} parent=5 // pred_region
        %s645 = ssub.s32 %s27, 1
        %p646 = scmp.lt.s32.totalorder %s36, 1
        %s647 = scalar_select %p646, %s36, 1
        %s648 = smul.addr %s647, 8
        %s649 = scalar_lea.vmem %s0, %s648
        %p650 = pneg %p65
        %p651 = pneg %p62
        %p652 = scmp.lt.s32.totalorder %s36, 1
        %s653 = scalar_select %p652, %s36, 1
        %s654 = scalar_lea.vmem %s1, %s653
        %p655 = pneg %p91
        %p656 = pneg %p88
        %p657 = scmp.lt.s32.totalorder %s37, 1
        %s658 = scalar_select %p657, %s37, 1
        %s659 = smul.addr %s658, 96
        %s660 = smul.addr %s659, 4
        %s661 = scalar_lea.vmem %s2, %s660
        %p662 = pneg %p117
        %p663 = pneg %p114
        %p664 = scmp.lt.s32.totalorder %s37, 1
        %s665 = scalar_select %p664, %s37, 1
        %s666 = smul.addr %s665, 8
        %s667 = scalar_lea.vmem %s3, %s666
        %p668 = pneg %p143
        %p669 = pneg %p140
        %p670 = scmp.lt.s32.totalorder %s37, 1
        %s671 = scalar_select %p670, %s37, 1
        %s672 = smul.addr %s671, 16
        %s673 = smul.addr %s672, 4
        %s674 = scalar_lea.vmem %s4, %s673
        %p675 = pneg %p169
        %p676 = pneg %p166
        %p677 = scmp.lt.s32.totalorder %s37, 1
        %s678 = scalar_select %p677, %s37, 1
        %s679 = scalar_lea.vmem %s5, %s678
        %p680 = pneg %p195
        %p681 = pneg %p192
        %p682 = scmp.lt.s32.totalorder %s37, 1
        %s683 = scalar_select %p682, %s37, 1
        %s684 = scalar_lea.vmem %s6, %s683
        %p685 = pneg %p221
        %p686 = pneg %p218
        %p687 = scmp.lt.s32.totalorder %s37, 1
        %s688 = scalar_select %p687, %s37, 1
        %s689 = scalar_lea.vmem %s7, %s688
        %p690 = pneg %p247
        %p691 = pneg %p244
        %p692 = scmp.lt.s32.totalorder %s37, 1
        %s693 = scalar_select %p692, %s37, 1
        %s694 = smul.addr %s693, 32
        %s695 = smul.addr %s694, 4
        %s696 = scalar_lea.vmem %s8, %s695
        %p697 = pneg %p273
        %p698 = pneg %p270
        %p699 = scmp.lt.s32.totalorder %s37, 1
        %s700 = scalar_select %p699, %s37, 1
        %s701 = smul.addr %s700, 2
        %s702 = scalar_lea.vmem %s9, %s701
        %p703 = pneg %p299
        %p704 = pneg %p296
        %p705 = scmp.lt.s32.totalorder %s37, 1
        %s706 = scalar_select %p705, %s37, 1
        %s707 = smul.addr %s706, 32
        %s708 = smul.addr %s707, 4
        %s709 = scalar_lea.vmem %s10, %s708
        %p710 = pneg %p325
        %p711 = pneg %p322
        %p712 = scmp.lt.s32.totalorder %s37, 1
        %s713 = scalar_select %p712, %s37, 1
        %s714 = scalar_lea.vmem %s11, %s713
        %p715 = pneg %p351
        %p716 = pneg %p348
        %p717 = scmp.lt.s32.totalorder %s37, 1
        %s718 = scalar_select %p717, %s37, 1
        %s719 = scalar_lea.vmem %s12, %s718
        %p720 = pneg %p377
        %p721 = pneg %p374
        %p722 = scmp.lt.s32.totalorder %s37, 1
        %s723 = scalar_select %p722, %s37, 1
        %s724 = scalar_lea.vmem %s13, %s723
        %p725 = pneg %p403
        %p726 = pneg %p400
        %p727 = pneg %p424
        %p728 = pneg %p421
        %p729 = pneg %p445
        %p730 = pneg %p442
        %p731 = pneg %p466
        %p732 = pneg %p463
        %p733 = pneg %p487
        %p734 = pneg %p484
        %p735 = pneg %p513
        %p736 = pneg %p510
        %s737 = sand.u32 %s500, 1
        %s738 = scalar_lea.sflag [#allocation4], %s737
        %s739 = sand.u32 %s500, 1
        %s740 = scalar_lea.vmem [#allocation3], %s739
        %p741 = scmp.lt.s32.totalorder %s36, 1
        %s742 = scalar_select %p741, %s36, 1
        %s743 = smul.addr %s742, 8
        %s744 = scalar_lea.vmem %s0, %s743
        %p745 = scmp.lt.s32.totalorder %s36, 1
        %s746 = scalar_select %p745, %s36, 1
        %s747 = scalar_lea.vmem %s1, %s746
        %p748 = scmp.lt.s32.totalorder %s37, 1
        %s749 = scalar_select %p748, %s37, 1
        %s750 = smul.addr %s749, 96
        %s751 = smul.addr %s750, 4
        %s752 = scalar_lea.vmem %s2, %s751
        %p753 = scmp.lt.s32.totalorder %s37, 1
        %s754 = scalar_select %p753, %s37, 1
        %s755 = smul.addr %s754, 8
        %s756 = scalar_lea.vmem %s3, %s755
        %p757 = scmp.lt.s32.totalorder %s37, 1
        %s758 = scalar_select %p757, %s37, 1
        %s759 = smul.addr %s758, 16
        %s760 = smul.addr %s759, 4
        %s761 = scalar_lea.vmem %s4, %s760
        %p762 = scmp.lt.s32.totalorder %s37, 1
        %s763 = scalar_select %p762, %s37, 1
        %s764 = scalar_lea.vmem %s5, %s763
        %p765 = scmp.lt.s32.totalorder %s37, 1
        %s766 = scalar_select %p765, %s37, 1
        %s767 = scalar_lea.vmem %s6, %s766
        %p768 = scmp.lt.s32.totalorder %s37, 1
        %s769 = scalar_select %p768, %s37, 1
        %s770 = scalar_lea.vmem %s7, %s769
        %p771 = scmp.lt.s32.totalorder %s37, 1
        %s772 = scalar_select %p771, %s37, 1
        %s773 = smul.addr %s772, 32
        %s774 = smul.addr %s773, 4
        %s775 = scalar_lea.vmem %s8, %s774
        %p776 = scmp.lt.s32.totalorder %s37, 1
        %s777 = scalar_select %p776, %s37, 1
        %s778 = smul.addr %s777, 2
        %s779 = scalar_lea.vmem %s9, %s778
        %p780 = scmp.lt.s32.totalorder %s37, 1
        %s781 = scalar_select %p780, %s37, 1
        %s782 = smul.addr %s781, 32
        %s783 = smul.addr %s782, 4
        %s784 = scalar_lea.vmem %s10, %s783
        %p785 = scmp.lt.s32.totalorder %s37, 1
        %s786 = scalar_select %p785, %s37, 1
        %s787 = scalar_lea.vmem %s11, %s786
        %p788 = scmp.lt.s32.totalorder %s37, 1
        %s789 = scalar_select %p788, %s37, 1
        %s790 = scalar_lea.vmem %s12, %s789
        %p791 = scmp.lt.s32.totalorder %s37, 1
        %s792 = scalar_select %p791, %s37, 1
        %s793 = scalar_lea.vmem %s13, %s792
        %p795 = scmp.eq.s32.totalorder %s37, 0
        // Predicated region
        $region93: #{_lambda_.1} parent=91 // pred_check
          %p796 = pneg %p795
        $region94: #{_lambda_.1} parent=91 // pred_check_branch
          %798 = sbr.rel (%p796) target = $region96
        $region95: #{_lambda_.1} parent=91 // pred_region
          %v799 = vld [vmem:[%s744] sm:$0xff]
          %800 = vst [vmem:[#allocation2] sm:$0xff] %v799
        $region96: #{_lambda_.1} parent=91 // pred_fallthru
          _
        %v801 = vld [vmem:[#allocation2] sm:$0xff]
        %v802 = vpack.c.bf16 %v801, %v801
        %v803 = vld [vmem:[%s747] sm:$0x1]
        %v804 = vld [vmem:[%s752] sm:$0xf]
        %v805 = vld [vmem:[%s752 + $0x4] sm:$0xf]
        %v806 = vld [vmem:[%s752 + $0x8] sm:$0xf]
        %v807 = vld [vmem:[%s752 + $0xc] sm:$0xf]
        %v808 = vld [vmem:[%s752 + $0x10] sm:$0xf]
        %v809 = vld [vmem:[%s752 + $0x14] sm:$0xf]
        %v810 = vld [vmem:[%s752 + $0x18] sm:$0xf]
        %v811 = vld [vmem:[%s752 + $0x1c] sm:$0xf]
        %v812 = vld [vmem:[%s752 + $0x20] sm:$0xf]
        %v813 = vld [vmem:[%s752 + $0x24] sm:$0xf]
        %v814 = vld [vmem:[%s752 + $0x28] sm:$0xf]
        %v815 = vld [vmem:[%s752 + $0x2c] sm:$0xf]
        %v816 = vld [vmem:[%s752 + $0x30] sm:$0xf]
        %v817 = vld [vmem:[%s752 + $0x34] sm:$0xf]
        %v818 = vld [vmem:[%s752 + $0x38] sm:$0xf]
        %v819 = vld [vmem:[%s752 + $0x3c] sm:$0xf]
        %v820 = vld [vmem:[%s756] sm:$0x1]
        %v821 = vperm.slane %v820, 0
        %v838 = vunpack.c.l.b16 %v804
        %v839 = vunpack.c.l.b16 %v805
        %v840 = vunpack.c.l.b16 %v806
        %v841 = vunpack.c.l.b16 %v807
        %v842 = vunpack.c.l.b16 %v808
        %v843 = vunpack.c.l.b16 %v809
        %v844 = vunpack.c.l.b16 %v810
        %v845 = vunpack.c.l.b16 %v811
        %v846 = vunpack.c.l.b16 %v812
        %v847 = vunpack.c.l.b16 %v813
        %v848 = vunpack.c.l.b16 %v814
        %v849 = vunpack.c.l.b16 %v815
        %v850 = vunpack.c.l.b16 %v816
        %v851 = vunpack.c.l.b16 %v817
        %v852 = vunpack.c.l.b16 %v818
        %v853 = vunpack.c.l.b16 %v819
        %v854 = vpack.c.b16 %v839, %v838
        %v855 = vpack.c.b16 %v841, %v840
        %v856 = vpack.c.b16 %v843, %v842
        %v857 = vpack.c.b16 %v845, %v844
        %v858 = vpack.c.b16 %v847, %v846
        %v859 = vpack.c.b16 %v849, %v848
        %v860 = vpack.c.b16 %v851, %v850
        %v861 = vpack.c.b16 %v853, %v852
        %870 = vmatpush.bf16.msra.mxu0 %v861
        %871 = vmatpush.bf16.msra.mxu0 %v860
        %872 = vmatpush.bf16.msra.mxu0 %v859
        %873 = vmatpush.bf16.msra.mxu0 %v858
        %874 = vmatpush.bf16.msra.mxu0 %v857
        %875 = vmatpush.bf16.msra.mxu0 %v856
        %876 = vmatpush.bf16.msra.mxu0 %v855
        %877 = vmatpush.bf16.msra.mxu0 %v854
        %878 = vmatmul.bf16.gmra.mxu0 %v802
        %v879 = vpop.f32.mrf.mxu0
        %v880 = vadd.f32 %v821, %v879
        %v881 = vpop.f32.mrf.mxu0
        %882 = vdwg.mxu0
        %s883 = scalar_lea.vmem %s752, 128
        %v884 = vld [vmem:[%s883] sm:$0xf]
        %v885 = vld [vmem:[%s883 + $0x4] sm:$0xf]
        %v886 = vld [vmem:[%s883 + $0x8] sm:$0xf]
        %v887 = vld [vmem:[%s883 + $0xc] sm:$0xf]
        %v888 = vld [vmem:[%s883 + $0x10] sm:$0xf]
        %v889 = vld [vmem:[%s883 + $0x14] sm:$0xf]
        %v890 = vld [vmem:[%s883 + $0x18] sm:$0xf]
        %v891 = vld [vmem:[%s883 + $0x1c] sm:$0xf]
        %v892 = vld [vmem:[%s883 + $0x20] sm:$0xf]
        %v893 = vld [vmem:[%s883 + $0x24] sm:$0xf]
        %v894 = vld [vmem:[%s883 + $0x28] sm:$0xf]
        %v895 = vld [vmem:[%s883 + $0x2c] sm:$0xf]
        %v896 = vld [vmem:[%s883 + $0x30] sm:$0xf]
        %v897 = vld [vmem:[%s883 + $0x34] sm:$0xf]
        %v898 = vld [vmem:[%s883 + $0x38] sm:$0xf]
        %v899 = vld [vmem:[%s883 + $0x3c] sm:$0xf]
        %v900 = vld [vmem:[%s756 + $0x2] sm:$0x1]
        %v901 = vperm.slane %v900, 0
        %v918 = vunpack.c.l.b16 %v884
        %v919 = vunpack.c.l.b16 %v885
        %v920 = vunpack.c.l.b16 %v886
        %v921 = vunpack.c.l.b16 %v887
        %v922 = vunpack.c.l.b16 %v888
        %v923 = vunpack.c.l.b16 %v889
        %v924 = vunpack.c.l.b16 %v890
        %v925 = vunpack.c.l.b16 %v891
        %v926 = vunpack.c.l.b16 %v892
        %v927 = vunpack.c.l.b16 %v893
        %v928 = vunpack.c.l.b16 %v894
        %v929 = vunpack.c.l.b16 %v895
        %v930 = vunpack.c.l.b16 %v896
        %v931 = vunpack.c.l.b16 %v897
        %v932 = vunpack.c.l.b16 %v898
        %v933 = vunpack.c.l.b16 %v899
        %v934 = vpack.c.b16 %v919, %v918
        %v935 = vpack.c.b16 %v921, %v920
        %v936 = vpack.c.b16 %v923, %v922
        %v937 = vpack.c.b16 %v925, %v924
        %v938 = vpack.c.b16 %v927, %v926
        %v939 = vpack.c.b16 %v929, %v928
        %v940 = vpack.c.b16 %v931, %v930
        %v941 = vpack.c.b16 %v933, %v932
        %950 = vmatpush.bf16.msra.mxu0 %v941
        %951 = vmatpush.bf16.msra.mxu0 %v940
        %952 = vmatpush.bf16.msra.mxu0 %v939
        %953 = vmatpush.bf16.msra.mxu0 %v938
        %954 = vmatpush.bf16.msra.mxu0 %v937
        %955 = vmatpush.bf16.msra.mxu0 %v936
        %956 = vmatpush.bf16.msra.mxu0 %v935
        %957 = vmatpush.bf16.msra.mxu0 %v934
        %958 = vmatmul.bf16.gmra.mxu0 %v802
        %v959 = vpop.f32.mrf.mxu0
        %v960 = vadd.f32 %v901, %v959
        %v961 = vpop.f32.mrf.mxu0
        %962 = vdwg.mxu0
        %s963 = scalar_lea.vmem %s752, 256
        %v964 = vld [vmem:[%s963] sm:$0xf]
        %v965 = vld [vmem:[%s963 + $0x4] sm:$0xf]
        %v966 = vld [vmem:[%s963 + $0x8] sm:$0xf]
        %v967 = vld [vmem:[%s963 + $0xc] sm:$0xf]
        %v968 = vld [vmem:[%s963 + $0x10] sm:$0xf]
        %v969 = vld [vmem:[%s963 + $0x14] sm:$0xf]
        %v970 = vld [vmem:[%s963 + $0x18] sm:$0xf]
        %v971 = vld [vmem:[%s963 + $0x1c] sm:$0xf]
        %v972 = vld [vmem:[%s963 + $0x20] sm:$0xf]
        %v973 = vld [vmem:[%s963 + $0x24] sm:$0xf]
        %v974 = vld [vmem:[%s963 + $0x28] sm:$0xf]
        %v975 = vld [vmem:[%s963 + $0x2c] sm:$0xf]
        %v976 = vld [vmem:[%s963 + $0x30] sm:$0xf]
        %v977 = vld [vmem:[%s963 + $0x34] sm:$0xf]
        %v978 = vld [vmem:[%s963 + $0x38] sm:$0xf]
        %v979 = vld [vmem:[%s963 + $0x3c] sm:$0xf]
        %v980 = vld [vmem:[%s756 + $0x4] sm:$0x1]
        %v981 = vperm.slane %v980, 0
        %v998 = vunpack.c.l.b16 %v964
        %v999 = vunpack.c.l.b16 %v965
        %v1000 = vunpack.c.l.b16 %v966
        %v1001 = vunpack.c.l.b16 %v967
        %v1002 = vunpack.c.l.b16 %v968
        %v1003 = vunpack.c.l.b16 %v969
        %v1004 = vunpack.c.l.b16 %v970
        %v1005 = vunpack.c.l.b16 %v971
        %v1006 = vunpack.c.l.b16 %v972
        %v1007 = vunpack.c.l.b16 %v973
        %v1008 = vunpack.c.l.b16 %v974
        %v1009 = vunpack.c.l.b16 %v975
        %v1010 = vunpack.c.l.b16 %v976
        %v1011 = vunpack.c.l.b16 %v977
        %v1012 = vunpack.c.l.b16 %v978
        %v1013 = vunpack.c.l.b16 %v979
        %v1014 = vpack.c.b16 %v999, %v998
        %v1015 = vpack.c.b16 %v1001, %v1000
        %v1016 = vpack.c.b16 %v1003, %v1002
        %v1017 = vpack.c.b16 %v1005, %v1004
        %v1018 = vpack.c.b16 %v1007, %v1006
        %v1019 = vpack.c.b16 %v1009, %v1008
        %v1020 = vpack.c.b16 %v1011, %v1010
        %v1021 = vpack.c.b16 %v1013, %v1012
        %1030 = vmatpush.bf16.msra.mxu0 %v1021
        %1031 = vmatpush.bf16.msra.mxu0 %v1020
        %1032 = vmatpush.bf16.msra.mxu0 %v1019
        %1033 = vmatpush.bf16.msra.mxu0 %v1018
        %1034 = vmatpush.bf16.msra.mxu0 %v1017
        %1035 = vmatpush.bf16.msra.mxu0 %v1016
        %1036 = vmatpush.bf16.msra.mxu0 %v1015
        %1037 = vmatpush.bf16.msra.mxu0 %v1014
        %1038 = vmatmul.bf16.gmra.mxu0 %v802
        %v1039 = vpop.f32.mrf.mxu0
        %v1040 = vadd.f32 %v981, %v1039
        %v1041 = vpop.f32.mrf.mxu0
        %1042 = vdwg.mxu0
        %v1043 = vpack.c.bf16 %v880, %v880
        %v1044 = vpack.c.bf16 %v960, %v960
        %vm1045 = vcmask 523264
        %v1047 = vsel %vm1045, %v1043, 0
        %v1050 = vsel %vm1045, %v1044, 0
        %1052 = vmatpush.bf16.xpose.msra.mxu0 0
        %1053 = vmatpush.bf16.xpose.msra.mxu0 0
        %1054 = vmatpush.bf16.xpose.msra.mxu0 0
        %1055 = vmatpush.bf16.xpose.msra.mxu0 0
        %1056 = vmatpush.bf16.xpose.msra.mxu0 0
        %1057 = vmatpush.bf16.xpose.msra.mxu0 0
        %1058 = vmatpush.bf16.xpose.msra.mxu0 0
        %1059 = vmatpush.bf16.xpose.msra.mxu0 %v1050
        %1060 = vmatmul.bf16.gmra.mxu0 %v1047
        %v1061 = vpop.f32.mrf.mxu0
        %v1062 = vadd.f32 0.0, %v1061
        %v1063 = vpop.f32.mrf.mxu0
        %1064 = vdwg.mxu0
        %v1065 = vmul.f32 %v1062, 0.125
        %v1067 = vperm.slane %v803, 0
        %v1069 = vadd.f32 %v1065, %v1067
        %vm1070 = vcmask 64512
        %v1071 = vsel %vm1070, %v1069, -inf
        %1072 = vmax.xlane.f32.xlu0 %v1071
        %v1073 = vpop.xlane.xlu0 %1072
        %v1074 = vsub.f32 %v1069, %v1073
        %v1075 = vmul.f32 %v1074, 1.442695
        %v1076 = vpow.pop %v1075
        %v1077 = vsel %vm1070, %v1076, 0.0
        %1078 = vadd.xlane.f32.xlu0 %v1077
        %v1079 = vpop.xlane.xlu0 %1078
        %v1080 = vrcp.pop %v1079
        %v1081 = vmul.f32 %v1079, %v1080
        %v1082 = vsub.f32 1.0, %v1081
        %v1083 = vmul.f32 %v1080, %v1082
        %v1084 = vadd.f32 %v1080, %v1083
        %vm1085 = vweird.f32 %v1079
        %vm1086 = vweird.f32 %v1080
        %vm1087 = vmor %vm1085, %vm1086
        %v1088 = vsel %vm1087, %v1080, %v1084
        %v1089 = vand.u32 2147483647, %v1079
        %vm1090 = vcmp.eq.f32.partialorder %v1089, 8.507059e+37
        %v1091 = vand.u32 %v1079, 2147483648
        %v1092 = vor.u32 1.1754944e-38, %v1091
        %v1093 = vsel %vm1090, %v1092, %v1088
        %v1094 = vmul.f32 %v1076, %v1093
        %v1095 = vpack.c.bf16 %v1094, %v1094
        %v1096 = vpack.c.bf16 %v1040, %v1040
        %v1098 = vsel %vm1070, %v1095, 0
        %vm1100 = vcmask 1043456
        %v1102 = vsel %vm1100, %v1096, 0
        %1104 = vmatpush.bf16.msra.mxu0 0
        %1105 = vmatpush.bf16.msra.mxu0 0
        %1106 = vmatpush.bf16.msra.mxu0 0
        %1107 = vmatpush.bf16.msra.mxu0 0
        %1108 = vmatpush.bf16.msra.mxu0 0
        %1109 = vmatpush.bf16.msra.mxu0 0
        %1110 = vmatpush.bf16.msra.mxu0 0
        %1111 = vmatpush.bf16.msra.mxu0 %v1102
        %1112 = vmatmul.bf16.gmra.mxu0 %v1098
        %v1113 = vpop.f32.mrf.mxu0
        %v1114 = vadd.f32 0.0, %v1113
        %v1115 = vpop.f32.mrf.mxu0
        %1116 = vdwg.mxu0
        %v1117 = vpack.c.bf16 %v1114, %v1114
        %v1118 = vld [vmem:[%s761] sm:$0xf]
        %v1119 = vld [vmem:[%s761 + $0x4] sm:$0xf]
        %v1120 = vld [vmem:[%s761 + $0x8] sm:$0xf]
        %v1121 = vld [vmem:[%s761 + $0xc] sm:$0xf]
        %v1122 = vld [vmem:[%s761 + $0x10] sm:$0xf]
        %v1123 = vld [vmem:[%s761 + $0x14] sm:$0xf]
        %v1124 = vld [vmem:[%s761 + $0x18] sm:$0xf]
        %v1125 = vld [vmem:[%s761 + $0x1c] sm:$0xf]
        %s1126 = scalar_lea.vmem %s752, 64
        %v1127 = vld [vmem:[%s1126] sm:$0xf]
        %v1128 = vld [vmem:[%s1126 + $0x4] sm:$0xf]
        %v1129 = vld [vmem:[%s1126 + $0x8] sm:$0xf]
        %v1130 = vld [vmem:[%s1126 + $0xc] sm:$0xf]
        %v1131 = vld [vmem:[%s1126 + $0x10] sm:$0xf]
        %v1132 = vld [vmem:[%s1126 + $0x14] sm:$0xf]
        %v1133 = vld [vmem:[%s1126 + $0x18] sm:$0xf]
        %v1134 = vld [vmem:[%s1126 + $0x1c] sm:$0xf]
        %v1135 = vld [vmem:[%s1126 + $0x20] sm:$0xf]
        %v1136 = vld [vmem:[%s1126 + $0x24] sm:$0xf]
        %v1137 = vld [vmem:[%s1126 + $0x28] sm:$0xf]
        %v1138 = vld [vmem:[%s1126 + $0x2c] sm:$0xf]
        %v1139 = vld [vmem:[%s1126 + $0x30] sm:$0xf]
        %v1140 = vld [vmem:[%s1126 + $0x34] sm:$0xf]
        %v1141 = vld [vmem:[%s1126 + $0x38] sm:$0xf]
        %v1142 = vld [vmem:[%s1126 + $0x3c] sm:$0xf]
        %v1143 = vld [vmem:[%s756 + $0x1] sm:$0x1]
        %v1144 = vperm.slane %v1143, 0
        %v1161 = vunpack.c.l.b16 %v1127
        %v1162 = vunpack.c.l.b16 %v1128
        %v1163 = vunpack.c.l.b16 %v1129
        %v1164 = vunpack.c.l.b16 %v1130
        %v1165 = vunpack.c.l.b16 %v1131
        %v1166 = vunpack.c.l.b16 %v1132
        %v1167 = vunpack.c.l.b16 %v1133
        %v1168 = vunpack.c.l.b16 %v1134
        %v1169 = vunpack.c.l.b16 %v1135
        %v1170 = vunpack.c.l.b16 %v1136
        %v1171 = vunpack.c.l.b16 %v1137
        %v1172 = vunpack.c.l.b16 %v1138
        %v1173 = vunpack.c.l.b16 %v1139
        %v1174 = vunpack.c.l.b16 %v1140
        %v1175 = vunpack.c.l.b16 %v1141
        %v1176 = vunpack.c.l.b16 %v1142
        %v1177 = vpack.c.b16 %v1162, %v1161
        %v1178 = vpack.c.b16 %v1164, %v1163
        %v1179 = vpack.c.b16 %v1166, %v1165
        %v1180 = vpack.c.b16 %v1168, %v1167
        %v1181 = vpack.c.b16 %v1170, %v1169
        %v1182 = vpack.c.b16 %v1172, %v1171
        %v1183 = vpack.c.b16 %v1174, %v1173
        %v1184 = vpack.c.b16 %v1176, %v1175
        %1193 = vmatpush.bf16.msra.mxu0 %v1184
        %1194 = vmatpush.bf16.msra.mxu0 %v1183
        %1195 = vmatpush.bf16.msra.mxu0 %v1182
        %1196 = vmatpush.bf16.msra.mxu0 %v1181
        %1197 = vmatpush.bf16.msra.mxu0 %v1180
        %1198 = vmatpush.bf16.msra.mxu0 %v1179
        %1199 = vmatpush.bf16.msra.mxu0 %v1178
        %1200 = vmatpush.bf16.msra.mxu0 %v1177
        %1201 = vmatmul.bf16.gmra.mxu0 %v802
        %v1202 = vpop.f32.mrf.mxu0
        %v1203 = vadd.f32 %v1144, %v1202
        %v1204 = vpop.f32.mrf.mxu0
        %1205 = vdwg.mxu0
        %s1206 = scalar_lea.vmem %s752, 192
        %v1207 = vld [vmem:[%s1206] sm:$0xf]
        %v1208 = vld [vmem:[%s1206 + $0x4] sm:$0xf]
        %v1209 = vld [vmem:[%s1206 + $0x8] sm:$0xf]
        %v1210 = vld [vmem:[%s1206 + $0xc] sm:$0xf]
        %v1211 = vld [vmem:[%s1206 + $0x10] sm:$0xf]
        %v1212 = vld [vmem:[%s1206 + $0x14] sm:$0xf]
        %v1213 = vld [vmem:[%s1206 + $0x18] sm:$0xf]
        %v1214 = vld [vmem:[%s1206 + $0x1c] sm:$0xf]
        %v1215 = vld [vmem:[%s1206 + $0x20] sm:$0xf]
        %v1216 = vld [vmem:[%s1206 + $0x24] sm:$0xf]
        %v1217 = vld [vmem:[%s1206 + $0x28] sm:$0xf]
        %v1218 = vld [vmem:[%s1206 + $0x2c] sm:$0xf]
        %v1219 = vld [vmem:[%s1206 + $0x30] sm:$0xf]
        %v1220 = vld [vmem:[%s1206 + $0x34] sm:$0xf]
        %v1221 = vld [vmem:[%s1206 + $0x38] sm:$0xf]
        %v1222 = vld [vmem:[%s1206 + $0x3c] sm:$0xf]
        %v1223 = vld [vmem:[%s756 + $0x3] sm:$0x1]
        %v1224 = vperm.slane %v1223, 0
        %v1241 = vunpack.c.l.b16 %v1207
        %v1242 = vunpack.c.l.b16 %v1208
        %v1243 = vunpack.c.l.b16 %v1209
        %v1244 = vunpack.c.l.b16 %v1210
        %v1245 = vunpack.c.l.b16 %v1211
        %v1246 = vunpack.c.l.b16 %v1212
        %v1247 = vunpack.c.l.b16 %v1213
        %v1248 = vunpack.c.l.b16 %v1214
        %v1249 = vunpack.c.l.b16 %v1215
        %v1250 = vunpack.c.l.b16 %v1216
        %v1251 = vunpack.c.l.b16 %v1217
        %v1252 = vunpack.c.l.b16 %v1218
        %v1253 = vunpack.c.l.b16 %v1219
        %v1254 = vunpack.c.l.b16 %v1220
        %v1255 = vunpack.c.l.b16 %v1221
        %v1256 = vunpack.c.l.b16 %v1222
        %v1257 = vpack.c.b16 %v1242, %v1241
        %v1258 = vpack.c.b16 %v1244, %v1243
        %v1259 = vpack.c.b16 %v1246, %v1245
        %v1260 = vpack.c.b16 %v1248, %v1247
        %v1261 = vpack.c.b16 %v1250, %v1249
        %v1262 = vpack.c.b16 %v1252, %v1251
        %v1263 = vpack.c.b16 %v1254, %v1253
        %v1264 = vpack.c.b16 %v1256, %v1255
        %1273 = vmatpush.bf16.msra.mxu0 %v1264
        %1274 = vmatpush.bf16.msra.mxu0 %v1263
        %1275 = vmatpush.bf16.msra.mxu0 %v1262
        %1276 = vmatpush.bf16.msra.mxu0 %v1261
        %1277 = vmatpush.bf16.msra.mxu0 %v1260
        %1278 = vmatpush.bf16.msra.mxu0 %v1259
        %1279 = vmatpush.bf16.msra.mxu0 %v1258
        %1280 = vmatpush.bf16.msra.mxu0 %v1257
        %1281 = vmatmul.bf16.gmra.mxu0 %v802
        %v1282 = vpop.f32.mrf.mxu0
        %v1283 = vadd.f32 %v1224, %v1282
        %v1284 = vpop.f32.mrf.mxu0
        %1285 = vdwg.mxu0
        %s1286 = scalar_lea.vmem %s752, 320
        %v1287 = vld [vmem:[%s1286] sm:$0xf]
        %v1288 = vld [vmem:[%s1286 + $0x4] sm:$0xf]
        %v1289 = vld [vmem:[%s1286 + $0x8] sm:$0xf]
        %v1290 = vld [vmem:[%s1286 + $0xc] sm:$0xf]
        %v1291 = vld [vmem:[%s1286 + $0x10] sm:$0xf]
        %v1292 = vld [vmem:[%s1286 + $0x14] sm:$0xf]
        %v1293 = vld [vmem:[%s1286 + $0x18] sm:$0xf]
        %v1294 = vld [vmem:[%s1286 + $0x1c] sm:$0xf]
        %v1295 = vld [vmem:[%s1286 + $0x20] sm:$0xf]
        %v1296 = vld [vmem:[%s1286 + $0x24] sm:$0xf]
        %v1297 = vld [vmem:[%s1286 + $0x28] sm:$0xf]
        %v1298 = vld [vmem:[%s1286 + $0x2c] sm:$0xf]
        %v1299 = vld [vmem:[%s1286 + $0x30] sm:$0xf]
        %v1300 = vld [vmem:[%s1286 + $0x34] sm:$0xf]
        %v1301 = vld [vmem:[%s1286 + $0x38] sm:$0xf]
        %v1302 = vld [vmem:[%s1286 + $0x3c] sm:$0xf]
        %v1303 = vld [vmem:[%s756 + $0x5] sm:$0x1]
        %v1304 = vperm.slane %v1303, 0
        %v1321 = vunpack.c.l.b16 %v1287
        %v1322 = vunpack.c.l.b16 %v1288
        %v1323 = vunpack.c.l.b16 %v1289
        %v1324 = vunpack.c.l.b16 %v1290
        %v1325 = vunpack.c.l.b16 %v1291
        %v1326 = vunpack.c.l.b16 %v1292
        %v1327 = vunpack.c.l.b16 %v1293
        %v1328 = vunpack.c.l.b16 %v1294
        %v1329 = vunpack.c.l.b16 %v1295
        %v1330 = vunpack.c.l.b16 %v1296
        %v1331 = vunpack.c.l.b16 %v1297
        %v1332 = vunpack.c.l.b16 %v1298
        %v1333 = vunpack.c.l.b16 %v1299
        %v1334 = vunpack.c.l.b16 %v1300
        %v1335 = vunpack.c.l.b16 %v1301
        %v1336 = vunpack.c.l.b16 %v1302
        %v1337 = vpack.c.b16 %v1322, %v1321
        %v1338 = vpack.c.b16 %v1324, %v1323
        %v1339 = vpack.c.b16 %v1326, %v1325
        %v1340 = vpack.c.b16 %v1328, %v1327
        %v1341 = vpack.c.b16 %v1330, %v1329
        %v1342 = vpack.c.b16 %v1332, %v1331
        %v1343 = vpack.c.b16 %v1334, %v1333
        %v1344 = vpack.c.b16 %v1336, %v1335
        %1353 = vmatpush.bf16.msra.mxu0 %v1344
        %1354 = vmatpush.bf16.msra.mxu0 %v1343
        %1355 = vmatpush.bf16.msra.mxu0 %v1342
        %1356 = vmatpush.bf16.msra.mxu0 %v1341
        %1357 = vmatpush.bf16.msra.mxu0 %v1340
        %1358 = vmatpush.bf16.msra.mxu0 %v1339
        %1359 = vmatpush.bf16.msra.mxu0 %v1338
        %1360 = vmatpush.bf16.msra.mxu0 %v1337
        %1361 = vmatmul.bf16.gmra.mxu0 %v802
        %v1362 = vpop.f32.mrf.mxu0
        %v1363 = vadd.f32 %v1304, %v1362
        %v1364 = vpop.f32.mrf.mxu0
        %1365 = vdwg.mxu0
        %v1366 = vpack.c.bf16 %v1203, %v1203
        %v1367 = vpack.c.bf16 %v1283, %v1283
        %v1369 = vsel %vm1045, %v1366, 0
        %v1372 = vsel %vm1045, %v1367, 0
        %1374 = vmatpush.bf16.xpose.msra.mxu0 0
        %1375 = vmatpush.bf16.xpose.msra.mxu0 0
        %1376 = vmatpush.bf16.xpose.msra.mxu0 0
        %1377 = vmatpush.bf16.xpose.msra.mxu0 0
        %1378 = vmatpush.bf16.xpose.msra.mxu0 0
        %1379 = vmatpush.bf16.xpose.msra.mxu0 0
        %1380 = vmatpush.bf16.xpose.msra.mxu0 0
        %1381 = vmatpush.bf16.xpose.msra.mxu0 %v1372
        %1382 = vmatmul.bf16.gmra.mxu0 %v1369
        %v1383 = vpop.f32.mrf.mxu0
        %v1384 = vadd.f32 0.0, %v1383
        %v1385 = vpop.f32.mrf.mxu0
        %1386 = vdwg.mxu0
        %v1387 = vmul.f32 %v1384, 0.125
        %v1388 = vadd.f32 %v1387, %v1067
        %v1389 = vsel %vm1070, %v1388, -inf
        %1390 = vmax.xlane.f32.xlu0 %v1389
        %v1391 = vpop.xlane.xlu0 %1390
        %v1392 = vsub.f32 %v1388, %v1391
        %v1393 = vmul.f32 %v1392, 1.442695
        %v1394 = vpow.pop %v1393
        %v1395 = vsel %vm1070, %v1394, 0.0
        %1396 = vadd.xlane.f32.xlu0 %v1395
        %v1397 = vpop.xlane.xlu0 %1396
        %v1398 = vrcp.pop %v1397
        %v1399 = vmul.f32 %v1397, %v1398
        %v1400 = vsub.f32 1.0, %v1399
        %v1401 = vmul.f32 %v1398, %v1400
        %v1402 = vadd.f32 %v1398, %v1401
        %vm1403 = vweird.f32 %v1397
        %vm1404 = vweird.f32 %v1398
        %vm1405 = vmor %vm1403, %vm1404
        %v1406 = vsel %vm1405, %v1398, %v1402
        %v1407 = vand.u32 2147483647, %v1397
        %vm1408 = vcmp.eq.f32.partialorder %v1407, 8.507059e+37
        %v1409 = vand.u32 %v1397, 2147483648
        %v1410 = vor.u32 1.1754944e-38, %v1409
        %v1411 = vsel %vm1408, %v1410, %v1406
        %v1412 = vmul.f32 %v1394, %v1411
        %v1413 = vpack.c.bf16 %v1412, %v1412
        %v1414 = vpack.c.bf16 %v1363, %v1363
        %v1416 = vsel %vm1070, %v1413, 0
        %v1419 = vsel %vm1100, %v1414, 0
        %1421 = vmatpush.bf16.msra.mxu0 0
        %1422 = vmatpush.bf16.msra.mxu0 0
        %1423 = vmatpush.bf16.msra.mxu0 0
        %1424 = vmatpush.bf16.msra.mxu0 0
        %1425 = vmatpush.bf16.msra.mxu0 0
        %1426 = vmatpush.bf16.msra.mxu0 0
        %1427 = vmatpush.bf16.msra.mxu0 0
        %1428 = vmatpush.bf16.msra.mxu0 %v1419
        %1429 = vmatmul.bf16.gmra.mxu0 %v1416
        %v1430 = vpop.f32.mrf.mxu0
        %v1431 = vadd.f32 0.0, %v1430
        %v1432 = vpop.f32.mrf.mxu0
        %1433 = vdwg.mxu0
        %v1434 = vpack.c.bf16 %v1431, %v1431
        %s1435 = scalar_lea.vmem %s761, 32
        %v1436 = vld [vmem:[%s1435] sm:$0xf]
        %v1437 = vld [vmem:[%s1435 + $0x4] sm:$0xf]
        %v1438 = vld [vmem:[%s1435 + $0x8] sm:$0xf]
        %v1439 = vld [vmem:[%s1435 + $0xc] sm:$0xf]
        %v1440 = vld [vmem:[%s1435 + $0x10] sm:$0xf]
        %v1441 = vld [vmem:[%s1435 + $0x14] sm:$0xf]
        %v1442 = vld [vmem:[%s1435 + $0x18] sm:$0xf]
        %v1443 = vld [vmem:[%s1435 + $0x1c] sm:$0xf]
        %v1452 = vunpack.c.l.b16 %v1436
        %v1453 = vunpack.c.l.b16 %v1437
        %v1454 = vunpack.c.l.b16 %v1438
        %v1455 = vunpack.c.l.b16 %v1439
        %v1456 = vunpack.c.l.b16 %v1440
        %v1457 = vunpack.c.l.b16 %v1441
        %v1458 = vunpack.c.l.b16 %v1442
        %v1459 = vunpack.c.l.b16 %v1443
        %v1460 = vpack.c.b16 %v1453, %v1452
        %v1461 = vpack.c.b16 %v1455, %v1454
        %v1462 = vpack.c.b16 %v1457, %v1456
        %v1463 = vpack.c.b16 %v1459, %v1458
        %v1469 = vsel %vm1045, %v1434, 0
        %1471 = vmatpush.bf16.msra.mxu0 0
        %1472 = vmatpush.bf16.msra.mxu0 0
        %1473 = vmatpush.bf16.msra.mxu0 0
        %1474 = vmatpush.bf16.msra.mxu0 0
        %1475 = vmatpush.bf16.msra.mxu0 %v1463
        %1476 = vmatpush.bf16.msra.mxu0 %v1462
        %1477 = vmatpush.bf16.msra.mxu0 %v1461
        %1478 = vmatpush.bf16.msra.mxu0 %v1460
        %1479 = vmatmul.bf16.gmra.mxu0 %v1469
        %v1480 = vpop.f32.mrf.mxu0
        %v1481 = vadd.f32 0.0, %v1480
        %v1482 = vpop.f32.mrf.mxu0
        %1483 = vdwg.mxu0
        %v1492 = vunpack.c.l.b16 %v1118
        %v1493 = vunpack.c.l.b16 %v1119
        %v1494 = vunpack.c.l.b16 %v1120
        %v1495 = vunpack.c.l.b16 %v1121
        %v1496 = vunpack.c.l.b16 %v1122
        %v1497 = vunpack.c.l.b16 %v1123
        %v1498 = vunpack.c.l.b16 %v1124
        %v1499 = vunpack.c.l.b16 %v1125
        %v1500 = vpack.c.b16 %v1493, %v1492
        %v1501 = vpack.c.b16 %v1495, %v1494
        %v1502 = vpack.c.b16 %v1497, %v1496
        %v1503 = vpack.c.b16 %v1499, %v1498
        %v1509 = vsel %vm1045, %v1117, 0
        %1511 = vmatpush.bf16.msra.mxu0 0
        %1512 = vmatpush.bf16.msra.mxu0 0
        %1513 = vmatpush.bf16.msra.mxu0 0
        %1514 = vmatpush.bf16.msra.mxu0 0
        %1515 = vmatpush.bf16.msra.mxu0 %v1503
        %1516 = vmatpush.bf16.msra.mxu0 %v1502
        %1517 = vmatpush.bf16.msra.mxu0 %v1501
        %1518 = vmatpush.bf16.msra.mxu0 %v1500
        %1519 = vmatmul.bf16.gmra.mxu0 %v1509
        %v1520 = vpop.f32.mrf.mxu0
        %v1521 = vadd.f32 %v1481, %v1520
        %v1522 = vpop.f32.mrf.mxu0
        %1523 = vdwg.mxu0
        %v1524 = vld [vmem:[%s764] sm:$0x1]
        %v1526 = vperm.slane %v1524, 0
        %v1528 = vadd.f32 %v1521, %v1526
        %v1529 = vadd.f32 %v1528, %v801
        %v1530 = vld [vmem:[%s767] sm:$0x1]
        %v1531 = vld [vmem:[%s770] sm:$0x1]
        %1532 = vadd.xlane.f32.xlu0 %v1529
        %v1533 = vpop.xlane.xlu0 %1532
        %v1534 = vrcp.pop 128.0
        %v1535 = vmul.f32 128.0, %v1534
        %v1536 = vsub.f32 1.0, %v1535
        %v1537 = vmul.f32 %v1534, %v1536
        %v1538 = vadd.f32 %v1534, %v1537
        %vm1539 = vweird.f32 %v1534
        %v1540 = vsel %vm1539, %v1534, %v1538
        %v1541 = vmul.f32 %v1533, %v1540
        %v1542 = vsub.f32 %v1529, %v1541
        %v1543 = vmul.f32 %v1542, %v1542
        %1544 = vadd.xlane.f32.xlu0 %v1543
        %v1545 = vpop.xlane.xlu0 %1544
        %v1546 = vmul.f32 %v1545, %v1540
        %v1547 = vadd.f32 %v1546, 1e-12
        %v1548 = vrsqrt.pop %v1547
        %v1549 = vmul.f32 %v1548, %v1547
        %v1550 = vmul.f32 %v1549, %v1548
        %v1551 = vmul.f32 0.5, %v1550
        %v1552 = vsub.f32 1.5, %v1551
        %v1553 = vmul.f32 %v1548, %v1552
        %vm1554 = vweird.f32 %v1547
        %vm1555 = vweird.f32 %v1548
        %vm1556 = vmor %vm1554, %vm1555
        %v1557 = vsel %vm1556, %v1548, %v1553
        %v1558 = vmul.f32 %v1542, %v1557
        %v1560 = vperm.slane %v1530, 0
        %v1562 = vmul.f32 %v1558, %v1560
        %v1564 = vperm.slane %v1531, 0
        %v1566 = vadd.f32 %v1562, %v1564
        %v1567 = vpack.c.bf16 %v1566, %v1566
        %v1568 = vld [vmem:[%s775] sm:$0xff]
        %v1569 = vld [vmem:[%s775 + $0x8] sm:$0xff]
        %v1570 = vld [vmem:[%s775 + $0x10] sm:$0xff]
        %v1571 = vld [vmem:[%s775 + $0x18] sm:$0xff]
        %v1572 = vld [vmem:[%s775 + $0x20] sm:$0xff]
        %v1573 = vld [vmem:[%s775 + $0x28] sm:$0xff]
        %v1574 = vld [vmem:[%s775 + $0x30] sm:$0xff]
        %v1575 = vld [vmem:[%s775 + $0x38] sm:$0xff]
        %v1576 = vld [vmem:[%s775 + $0x40] sm:$0xff]
        %v1577 = vld [vmem:[%s775 + $0x48] sm:$0xff]
        %v1578 = vld [vmem:[%s775 + $0x50] sm:$0xff]
        %v1579 = vld [vmem:[%s775 + $0x58] sm:$0xff]
        %v1580 = vld [vmem:[%s775 + $0x60] sm:$0xff]
        %v1581 = vld [vmem:[%s775 + $0x68] sm:$0xff]
        %v1582 = vld [vmem:[%s775 + $0x70] sm:$0xff]
        %v1583 = vld [vmem:[%s775 + $0x78] sm:$0xff]
        %v1584 = vld [vmem:[%s779] sm:$0x3]
        %v1586 = vperm.slane %v1584, 0
        %v1587 = vperm.slane %v1584, 1
        %v1606 = vunpack.c.l.b16 %v1568
        %v1607 = vunpack.c.h.b16 %v1568
        %v1608 = vunpack.c.l.b16 %v1569
        %v1609 = vunpack.c.h.b16 %v1569
        %v1610 = vunpack.c.l.b16 %v1570
        %v1611 = vunpack.c.h.b16 %v1570
        %v1612 = vunpack.c.l.b16 %v1571
        %v1613 = vunpack.c.h.b16 %v1571
        %v1614 = vunpack.c.l.b16 %v1572
        %v1615 = vunpack.c.h.b16 %v1572
        %v1616 = vunpack.c.l.b16 %v1573
        %v1617 = vunpack.c.h.b16 %v1573
        %v1618 = vunpack.c.l.b16 %v1574
        %v1619 = vunpack.c.h.b16 %v1574
        %v1620 = vunpack.c.l.b16 %v1575
        %v1621 = vunpack.c.h.b16 %v1575
        %v1622 = vunpack.c.l.b16 %v1576
        %v1623 = vunpack.c.h.b16 %v1576
        %v1624 = vunpack.c.l.b16 %v1577
        %v1625 = vunpack.c.h.b16 %v1577
        %v1626 = vunpack.c.l.b16 %v1578
        %v1627 = vunpack.c.h.b16 %v1578
        %v1628 = vunpack.c.l.b16 %v1579
        %v1629 = vunpack.c.h.b16 %v1579
        %v1630 = vunpack.c.l.b16 %v1580
        %v1631 = vunpack.c.h.b16 %v1580
        %v1632 = vunpack.c.l.b16 %v1581
        %v1633 = vunpack.c.h.b16 %v1581
        %v1634 = vunpack.c.l.b16 %v1582
        %v1635 = vunpack.c.h.b16 %v1582
        %v1636 = vunpack.c.l.b16 %v1583
        %v1637 = vunpack.c.h.b16 %v1583
        %v1638 = vpack.c.b16 %v1608, %v1606
        %v1639 = vpack.c.b16 %v1609, %v1607
        %v1640 = vpack.c.b16 %v1612, %v1610
        %v1641 = vpack.c.b16 %v1613, %v1611
        %v1642 = vpack.c.b16 %v1616, %v1614
        %v1643 = vpack.c.b16 %v1617, %v1615
        %v1644 = vpack.c.b16 %v1620, %v1618
        %v1645 = vpack.c.b16 %v1621, %v1619
        %v1646 = vpack.c.b16 %v1624, %v1622
        %v1647 = vpack.c.b16 %v1625, %v1623
        %v1648 = vpack.c.b16 %v1628, %v1626
        %v1649 = vpack.c.b16 %v1629, %v1627
        %v1650 = vpack.c.b16 %v1632, %v1630
        %v1651 = vpack.c.b16 %v1633, %v1631
        %v1652 = vpack.c.b16 %v1636, %v1634
        %v1653 = vpack.c.b16 %v1637, %v1635
        %1670 = vmatpush.bf16.msra.mxu0 %v1652
        %1671 = vmatpush.bf16.msra.mxu0 %v1650
        %1672 = vmatpush.bf16.msra.mxu0 %v1648
        %1673 = vmatpush.bf16.msra.mxu0 %v1646
        %1674 = vmatpush.bf16.msra.mxu0 %v1644
        %1675 = vmatpush.bf16.msra.mxu0 %v1642
        %1676 = vmatpush.bf16.msra.mxu0 %v1640
        %1677 = vmatpush.bf16.msra.mxu0 %v1638
        %1678 = vmatmul.bf16.gmra.mxu0 %v1567
        %v1679 = vpop.f32.mrf.mxu0
        %v1680 = vadd.f32 %v1586, %v1679
        %v1681 = vpop.f32.mrf.mxu0
        %1682 = vdwg.mxu0
        %1683 = vmatpush.bf16.msra.mxu0 %v1653
        %1684 = vmatpush.bf16.msra.mxu0 %v1651
        %1685 = vmatpush.bf16.msra.mxu0 %v1649
        %1686 = vmatpush.bf16.msra.mxu0 %v1647
        %1687 = vmatpush.bf16.msra.mxu0 %v1645
        %1688 = vmatpush.bf16.msra.mxu0 %v1643
        %1689 = vmatpush.bf16.msra.mxu0 %v1641
        %1690 = vmatpush.bf16.msra.mxu0 %v1639
        %1691 = vmatmul.bf16.gmra.mxu0 %v1567
        %v1692 = vpop.f32.mrf.mxu0
        %v1693 = vadd.f32 %v1587, %v1692
        %v1694 = vpop.f32.mrf.mxu0
        %1695 = vdwg.mxu0
        %v1696 = vmul.f32 %v1680, %v1680
        %v1697 = vmul.f32 %v1693, %v1693
        %v1698 = vmul.f32 %v1680, %v1696
        %v1699 = vmul.f32 %v1693, %v1697
        %v1700 = vmul.f32 %v1698, 0.044715
        %v1701 = vmul.f32 %v1699, 0.044715
        %v1702 = vadd.f32 %v1680, %v1700
        %v1703 = vadd.f32 %v1693, %v1701
        %v1704 = vmul.f32 %v1702, 0.7978846
        %v1705 = vmul.f32 %v1703, 0.7978846
        %v1706 = vtanh.pop %v1704
        %v1707 = vtanh.pop %v1705
        %v1708 = vadd.f32 %v1706, 1.0
        %v1709 = vadd.f32 %v1707, 1.0
        %v1710 = vmul.f32 %v1708, 0.5
        %v1711 = vmul.f32 %v1709, 0.5
        %v1712 = vmul.f32 %v1680, %v1710
        %v1713 = vmul.f32 %v1693, %v1711
        %v1714 = vpack.c.bf16 %v1712, %v1712
        %v1715 = vpack.c.bf16 %v1713, %v1713
        %v1716 = vld [vmem:[%s784] sm:$0xf]
        %v1717 = vld [vmem:[%s784 + $0x4] sm:$0xf]
        %v1718 = vld [vmem:[%s784 + $0x8] sm:$0xf]
        %v1719 = vld [vmem:[%s784 + $0xc] sm:$0xf]
        %v1720 = vld [vmem:[%s784 + $0x10] sm:$0xf]
        %v1721 = vld [vmem:[%s784 + $0x14] sm:$0xf]
        %v1722 = vld [vmem:[%s784 + $0x18] sm:$0xf]
        %v1723 = vld [vmem:[%s784 + $0x1c] sm:$0xf]
        %v1724 = vld [vmem:[%s784 + $0x20] sm:$0xf]
        %v1725 = vld [vmem:[%s784 + $0x24] sm:$0xf]
        %v1726 = vld [vmem:[%s784 + $0x28] sm:$0xf]
        %v1727 = vld [vmem:[%s784 + $0x2c] sm:$0xf]
        %v1728 = vld [vmem:[%s784 + $0x30] sm:$0xf]
        %v1729 = vld [vmem:[%s784 + $0x34] sm:$0xf]
        %v1730 = vld [vmem:[%s784 + $0x38] sm:$0xf]
        %v1731 = vld [vmem:[%s784 + $0x3c] sm:$0xf]
        %v1732 = vld [vmem:[%s784 + $0x40] sm:$0xf]
        %v1733 = vld [vmem:[%s784 + $0x44] sm:$0xf]
        %v1734 = vld [vmem:[%s784 + $0x48] sm:$0xf]
        %v1735 = vld [vmem:[%s784 + $0x4c] sm:$0xf]
        %v1736 = vld [vmem:[%s784 + $0x50] sm:$0xf]
        %v1737 = vld [vmem:[%s784 + $0x54] sm:$0xf]
        %v1738 = vld [vmem:[%s784 + $0x58] sm:$0xf]
        %v1739 = vld [vmem:[%s784 + $0x5c] sm:$0xf]
        %v1740 = vld [vmem:[%s784 + $0x60] sm:$0xf]
        %v1741 = vld [vmem:[%s784 + $0x64] sm:$0xf]
        %v1742 = vld [vmem:[%s784 + $0x68] sm:$0xf]
        %v1743 = vld [vmem:[%s784 + $0x6c] sm:$0xf]
        %v1744 = vld [vmem:[%s784 + $0x70] sm:$0xf]
        %v1745 = vld [vmem:[%s784 + $0x74] sm:$0xf]
        %v1746 = vld [vmem:[%s784 + $0x78] sm:$0xf]
        %v1747 = vld [vmem:[%s784 + $0x7c] sm:$0xf]
        %v1748 = vld [vmem:[%s787] sm:$0x1]
        %v1750 = vperm.slane %v1748, 0
        %v1784 = vunpack.c.l.b16 %v1716
        %v1785 = vunpack.c.l.b16 %v1717
        %v1786 = vunpack.c.l.b16 %v1718
        %v1787 = vunpack.c.l.b16 %v1719
        %v1788 = vunpack.c.l.b16 %v1720
        %v1789 = vunpack.c.l.b16 %v1721
        %v1790 = vunpack.c.l.b16 %v1722
        %v1791 = vunpack.c.l.b16 %v1723
        %v1792 = vunpack.c.l.b16 %v1724
        %v1793 = vunpack.c.l.b16 %v1725
        %v1794 = vunpack.c.l.b16 %v1726
        %v1795 = vunpack.c.l.b16 %v1727
        %v1796 = vunpack.c.l.b16 %v1728
        %v1797 = vunpack.c.l.b16 %v1729
        %v1798 = vunpack.c.l.b16 %v1730
        %v1799 = vunpack.c.l.b16 %v1731
        %v1800 = vunpack.c.l.b16 %v1732
        %v1801 = vunpack.c.l.b16 %v1733
        %v1802 = vunpack.c.l.b16 %v1734
        %v1803 = vunpack.c.l.b16 %v1735
        %v1804 = vunpack.c.l.b16 %v1736
        %v1805 = vunpack.c.l.b16 %v1737
        %v1806 = vunpack.c.l.b16 %v1738
        %v1807 = vunpack.c.l.b16 %v1739
        %v1808 = vunpack.c.l.b16 %v1740
        %v1809 = vunpack.c.l.b16 %v1741
        %v1810 = vunpack.c.l.b16 %v1742
        %v1811 = vunpack.c.l.b16 %v1743
        %v1812 = vunpack.c.l.b16 %v1744
        %v1813 = vunpack.c.l.b16 %v1745
        %v1814 = vunpack.c.l.b16 %v1746
        %v1815 = vunpack.c.l.b16 %v1747
        %v1816 = vpack.c.b16 %v1785, %v1784
        %v1817 = vpack.c.b16 %v1787, %v1786
        %v1818 = vpack.c.b16 %v1789, %v1788
        %v1819 = vpack.c.b16 %v1791, %v1790
        %v1820 = vpack.c.b16 %v1793, %v1792
        %v1821 = vpack.c.b16 %v1795, %v1794
        %v1822 = vpack.c.b16 %v1797, %v1796
        %v1823 = vpack.c.b16 %v1799, %v1798
        %v1824 = vpack.c.b16 %v1801, %v1800
        %v1825 = vpack.c.b16 %v1803, %v1802
        %v1826 = vpack.c.b16 %v1805, %v1804
        %v1827 = vpack.c.b16 %v1807, %v1806
        %v1828 = vpack.c.b16 %v1809, %v1808
        %v1829 = vpack.c.b16 %v1811, %v1810
        %v1830 = vpack.c.b16 %v1813, %v1812
        %v1831 = vpack.c.b16 %v1815, %v1814
        %1848 = vmatpush.bf16.msra.mxu0 %v1823
        %1849 = vmatpush.bf16.msra.mxu0 %v1822
        %1850 = vmatpush.bf16.msra.mxu0 %v1821
        %1851 = vmatpush.bf16.msra.mxu0 %v1820
        %1852 = vmatpush.bf16.msra.mxu0 %v1819
        %1853 = vmatpush.bf16.msra.mxu0 %v1818
        %1854 = vmatpush.bf16.msra.mxu0 %v1817
        %1855 = vmatpush.bf16.msra.mxu0 %v1816
        %1856 = vmatmul.bf16.gmra.mxu0 %v1714
        %v1857 = vpop.f32.mrf.mxu0
        %v1858 = vadd.f32 %v1750, %v1857
        %v1859 = vpop.f32.mrf.mxu0
        %1860 = vdwg.mxu0
        %1861 = vmatpush.bf16.msra.mxu0 %v1831
        %1862 = vmatpush.bf16.msra.mxu0 %v1830
        %1863 = vmatpush.bf16.msra.mxu0 %v1829
        %1864 = vmatpush.bf16.msra.mxu0 %v1828
        %1865 = vmatpush.bf16.msra.mxu0 %v1827
        %1866 = vmatpush.bf16.msra.mxu0 %v1826
        %1867 = vmatpush.bf16.msra.mxu0 %v1825
        %1868 = vmatpush.bf16.msra.mxu0 %v1824
        %1869 = vmatmul.bf16.gmra.mxu0 %v1715
        %v1870 = vpop.f32.mrf.mxu0
        %v1871 = vadd.f32 %v1858, %v1870
        %v1872 = vpop.f32.mrf.mxu0
        %1873 = vdwg.mxu0
        %v1874 = vadd.f32 %v1871, %v1566
        %v1875 = vld [vmem:[%s790] sm:$0x1]
        %v1876 = vld [vmem:[%s793] sm:$0x1]
        %1877 = vadd.xlane.f32.xlu0 %v1874
        %v1878 = vpop.xlane.xlu0 %1877
        %v1879 = vmul.f32 %v1878, %v1540
        %v1880 = vsub.f32 %v1874, %v1879
        %v1881 = vmul.f32 %v1880, %v1880
        %1882 = vadd.xlane.f32.xlu0 %v1881
        %v1883 = vpop.xlane.xlu0 %1882
        %v1884 = vmul.f32 %v1883, %v1540
        %v1885 = vadd.f32 %v1884, 1e-12
        %v1886 = vrsqrt.pop %v1885
        %v1887 = vmul.f32 %v1886, %v1885
        %v1888 = vmul.f32 %v1887, %v1886
        %v1889 = vmul.f32 0.5, %v1888
        %v1890 = vsub.f32 1.5, %v1889
        %v1891 = vmul.f32 %v1886, %v1890
        %vm1892 = vweird.f32 %v1885
        %vm1893 = vweird.f32 %v1886
        %vm1894 = vmor %vm1892, %vm1893
        %v1895 = vsel %vm1894, %v1886, %v1891
        %v1896 = vmul.f32 %v1880, %v1895
        %v1898 = vperm.slane %v1875, 0
        %v1900 = vmul.f32 %v1896, %v1898
        %v1902 = vperm.slane %v1876, 0
        %v1904 = vadd.f32 %v1900, %v1902
        %1905 = vst [vmem:[#allocation2] sm:$0xff] %v1904
        %p1906 = scmp.eq.s32.totalorder %s37, 1
        // Predicated region
        $region97: #{_lambda_.1} parent=91 // pred_check
          %p1907 = pneg %p1906
        $region98: #{_lambda_.1} parent=91 // pred_check_branch
          %1909 = sbr.rel (%p1907) target = $region100
        $region99: #{_lambda_.1} parent=91 // pred_region
          %v1910 = vpack.c.bf16 %v1904, %v1904
          %v1911 = vld [vmem:[%s14] sm:$0xf]
          %v1912 = vld [vmem:[%s14 + $0x4] sm:$0xf]
          %v1913 = vld [vmem:[%s14 + $0x8] sm:$0xf]
          %v1914 = vld [vmem:[%s14 + $0xc] sm:$0xf]
          %v1915 = vld [vmem:[%s14 + $0x10] sm:$0xf]
          %v1916 = vld [vmem:[%s14 + $0x14] sm:$0xf]
          %v1917 = vld [vmem:[%s14 + $0x18] sm:$0xf]
          %v1918 = vld [vmem:[%s14 + $0x1c] sm:$0xf]
          %v1919 = vld [vmem:[%s14 + $0x20] sm:$0xf]
          %v1920 = vld [vmem:[%s14 + $0x24] sm:$0xf]
          %v1921 = vld [vmem:[%s14 + $0x28] sm:$0xf]
          %v1922 = vld [vmem:[%s14 + $0x2c] sm:$0xf]
          %v1923 = vld [vmem:[%s14 + $0x30] sm:$0xf]
          %v1924 = vld [vmem:[%s14 + $0x34] sm:$0xf]
          %v1925 = vld [vmem:[%s14 + $0x38] sm:$0xf]
          %v1926 = vld [vmem:[%s14 + $0x3c] sm:$0xf]
          %v1927 = vld [vmem:[%s15] sm:$0x1]
          %v1944 = vunpack.c.l.b16 %v1911
          %v1945 = vunpack.c.l.b16 %v1912
          %v1946 = vunpack.c.l.b16 %v1913
          %v1947 = vunpack.c.l.b16 %v1914
          %v1948 = vunpack.c.l.b16 %v1915
          %v1949 = vunpack.c.l.b16 %v1916
          %v1950 = vunpack.c.l.b16 %v1917
          %v1951 = vunpack.c.l.b16 %v1918
          %v1952 = vunpack.c.l.b16 %v1919
          %v1953 = vunpack.c.l.b16 %v1920
          %v1954 = vunpack.c.l.b16 %v1921
          %v1955 = vunpack.c.l.b16 %v1922
          %v1956 = vunpack.c.l.b16 %v1923
          %v1957 = vunpack.c.l.b16 %v1924
          %v1958 = vunpack.c.l.b16 %v1925
          %v1959 = vunpack.c.l.b16 %v1926
          %v1960 = vpack.c.b16 %v1945, %v1944
          %v1961 = vpack.c.b16 %v1947, %v1946
          %v1962 = vpack.c.b16 %v1949, %v1948
          %v1963 = vpack.c.b16 %v1951, %v1950
          %v1964 = vpack.c.b16 %v1953, %v1952
          %v1965 = vpack.c.b16 %v1955, %v1954
          %v1966 = vpack.c.b16 %v1957, %v1956
          %v1967 = vpack.c.b16 %v1959, %v1958
          %1976 = vmatpush.bf16.msra.mxu0 %v1967
          %1977 = vmatpush.bf16.msra.mxu0 %v1966
          %1978 = vmatpush.bf16.msra.mxu0 %v1965
          %1979 = vmatpush.bf16.msra.mxu0 %v1964
          %1980 = vmatpush.bf16.msra.mxu0 %v1963
          %1981 = vmatpush.bf16.msra.mxu0 %v1962
          %1982 = vmatpush.bf16.msra.mxu0 %v1961
          %1983 = vmatpush.bf16.msra.mxu0 %v1960
          %1984 = vmatmul.bf16.gmra.mxu0 %v1910
          %v1985 = vpop.f32.mrf.mxu0
          %v1986 = vadd.f32 %v1927, %v1985
          %v1987 = vpop.f32.mrf.mxu0
          %1988 = vdwg.mxu0
          %v1989 = vmax.f32 %v1986, 0.0
          %v1990 = vpack.c.bf16 %v1989, %v1989
          %v1991 = vld [vmem:[%s16] sm:$0xf]
          %v1992 = vld [vmem:[%s16 + $0x4] sm:$0xf]
          %v1993 = vld [vmem:[%s16 + $0x8] sm:$0xf]
          %v1994 = vld [vmem:[%s16 + $0xc] sm:$0xf]
          %v1995 = vld [vmem:[%s16 + $0x10] sm:$0xf]
          %v1996 = vld [vmem:[%s16 + $0x14] sm:$0xf]
          %v1997 = vld [vmem:[%s16 + $0x18] sm:$0xf]
          %v1998 = vld [vmem:[%s16 + $0x1c] sm:$0xf]
          %v1999 = vld [vmem:[%s16 + $0x20] sm:$0xf]
          %v2000 = vld [vmem:[%s16 + $0x24] sm:$0xf]
          %v2001 = vld [vmem:[%s16 + $0x28] sm:$0xf]
          %v2002 = vld [vmem:[%s16 + $0x2c] sm:$0xf]
          %v2003 = vld [vmem:[%s16 + $0x30] sm:$0xf]
          %v2004 = vld [vmem:[%s16 + $0x34] sm:$0xf]
          %v2005 = vld [vmem:[%s16 + $0x38] sm:$0xf]
          %v2006 = vld [vmem:[%s16 + $0x3c] sm:$0xf]
          %v2007 = vld [vmem:[%s17] sm:$0x1]
          %v2024 = vunpack.c.l.b16 %v1991
          %v2025 = vunpack.c.l.b16 %v1992
          %v2026 = vunpack.c.l.b16 %v1993
          %v2027 = vunpack.c.l.b16 %v1994
          %v2028 = vunpack.c.l.b16 %v1995
          %v2029 = vunpack.c.l.b16 %v1996
          %v2030 = vunpack.c.l.b16 %v1997
          %v2031 = vunpack.c.l.b16 %v1998
          %v2032 = vunpack.c.l.b16 %v1999
          %v2033 = vunpack.c.l.b16 %v2000
          %v2034 = vunpack.c.l.b16 %v2001
          %v2035 = vunpack.c.l.b16 %v2002
          %v2036 = vunpack.c.l.b16 %v2003
          %v2037 = vunpack.c.l.b16 %v2004
          %v2038 = vunpack.c.l.b16 %v2005
          %v2039 = vunpack.c.l.b16 %v2006
          %v2040 = vpack.c.b16 %v2025, %v2024
          %v2041 = vpack.c.b16 %v2027, %v2026
          %v2042 = vpack.c.b16 %v2029, %v2028
          %v2043 = vpack.c.b16 %v2031, %v2030
          %v2044 = vpack.c.b16 %v2033, %v2032
          %v2045 = vpack.c.b16 %v2035, %v2034
          %v2046 = vpack.c.b16 %v2037, %v2036
          %v2047 = vpack.c.b16 %v2039, %v2038
          %2056 = vmatpush.bf16.msra.mxu0 %v2047
          %2057 = vmatpush.bf16.msra.mxu0 %v2046
          %2058 = vmatpush.bf16.msra.mxu0 %v2045
          %2059 = vmatpush.bf16.msra.mxu0 %v2044
          %2060 = vmatpush.bf16.msra.mxu0 %v2043
          %2061 = vmatpush.bf16.msra.mxu0 %v2042
          %2062 = vmatpush.bf16.msra.mxu0 %v2041
          %2063 = vmatpush.bf16.msra.mxu0 %v2040
          %2064 = vmatmul.bf16.gmra.mxu0 %v1990
          %v2065 = vpop.f32.mrf.mxu0
          %v2066 = vadd.f32 %v2007, %v2065
          %v2067 = vpop.f32.mrf.mxu0
          %2068 = vdwg.mxu0
          %vm2069 = vcmask 24576
          %2070 = vst.msk [vmem:[%s740] sm:$0x1] %vm2069, %v2066
        $region100: #{_lambda_.1} parent=91 // pred_fallthru
          _
        %s2071 = sand.u32 %s500, 1
        %s2072 = scalar_lea.sflag [#allocation4], %s2071
        %s2073 = sand.u32 %s500, 1
        %s2074 = scalar_lea.vmem [#allocation3], %s2073
        // Predicated region
        $region101: #{_lambda_.1} parent=91 // pred_check
          %p2075 = pneg %p510
        $region102: #{_lambda_.1} parent=91 // pred_check_branch
          %2077 = sbr.rel (%p2075) target = $region104
        $region103: #{_lambda_.1} parent=91 // pred_region
          %2079 = vsyncadd %s2072, 0
          %s2080 = scalar_lea.hbm %s18, %s36
          %s2082 = sshll.u32 %s2074, 4
          %s2083 = int_to_ptr.vmem [resolvable:$true] %s2082
          %s2084 = sshll.u32 %s2080, 4
          %s2085 = int_to_ptr.hbm [resolvable:$true] %s2084
          %2087 = dma.vmem_to_hbm [thread:$0]  %s2083, 16, %s2085, %s2072
        $region104: #{_lambda_.1} parent=91 // pred_fallthru
          _
      $region92: #{_lambda_.1} parent=5 // pred_fallthru
        _
      %p2088 = scmp.le.s32.totalorder 2, %s27
      // Predicated region
      $region105: #{_lambda_.1} parent=5 // pred_check
        %p2089 = pneg %p2088
      $region106: #{_lambda_.1} parent=5 // pred_check_branch
        %2091 = sbr.rel (%p2089) target = $region108
      $region107: #{_lambda_.1} parent=5 // pred_region
        %s2092 = ssub.s32 %s27, 2
        // Predicated region
        $region109: #{_lambda_.1} parent=107 // pred_check
          %p2093 = pneg %p516
        $region110: #{_lambda_.1} parent=107 // pred_check_branch
          %2095 = sbr.rel (%p2093) target = $region112
        $region111: #{_lambda_.1} parent=107 // pred_region
          %s2096 = sand.u32 %s501, 1
          %s2097 = scalar_lea.sflag [#allocation4], %s2096
          %s2098 = sand.u32 %s501, 1
          %s2099 = scalar_lea.vmem [#allocation3], %s2098
          %2101 = dma.done %s2097, 16
        $region112: #{_lambda_.1} parent=107 // pred_fallthru
          _
      $region108: #{_lambda_.1} parent=5 // pred_fallthru
        _
    $region6: #{_lambda_.1} parent=1 // loop_footer
      %s31 = sadd.s32 1, %s27
    $region7: #{_lambda_.1} parent=1 // loop_footer_branch
      %26 = sbr.rel target = $region3
    $region8: #{_lambda_.1} parent=1 // loop_exit
      _
    %2102 = vsyncpa [#allocation4], 1
    %s2103 = scalar_lea.sflag [#allocation4], 1
    %2104 = vsyncpa %s2103, 1

</llo_original>
